<compile_context>
chip_gen: v6e
topology: v6e:2x2x1
jax: 0.10.0
libtpu: 0.0.40
codegen_flags: <defaults>
</compile_context>

<pallas_src>
import math
import jax
import jax.numpy as jnp
from jax.experimental import pallas as pl
from jax.experimental.pallas import tpu as pltpu


ALL_DIM = 120   # 15 fields * dim(8)
PAD_DIM = 128   # feature dim padded to a full lane tile


# ----------------------------- Pallas kernel -------------------------------

def _make_kernel(tb, total_b):
    def kernel(x_ref, lbl_ref,
               wd0, bd0, wd1, bd1, wd2, bd2,
               w1, b1, w2, b2, w3, b3, w4, b4,
               prob_ref, loss_ref):
        # features: (PAD_DIM, TB), batch on lanes
        x0 = x_ref[...].astype(jnp.float32)
        xl = x0

        # ---- 3 x DCNBlock: cross = x0 * (W @ xl + b) + xl ----
        for w_r, b_r in ((wd0, bd0), (wd1, bd1), (wd2, bd2)):
            y = jnp.dot(w_r[...], xl.astype(jnp.bfloat16),
                        preferred_element_type=jnp.float32) + b_r[...]
            xl = x0 * y + xl

        # ---- MLP head: 128 -> 128 -> 64 -> 32 with ReLU (bf16 MXU, f32 acc) ----
        h = jnp.dot(w1[...], xl.astype(jnp.bfloat16),
                    preferred_element_type=jnp.float32) + b1[...]
        h = jnp.maximum(h, 0.0)
        h = jnp.dot(w2[...], h.astype(jnp.bfloat16),
                    preferred_element_type=jnp.float32) + b2[...]
        h = jnp.maximum(h, 0.0)
        h = jnp.dot(w3[...], h.astype(jnp.bfloat16),
                    preferred_element_type=jnp.float32) + b3[...]
        h = jnp.maximum(h, 0.0)

        # ---- final (out_dim = 1) layer: VPU mul + XLU sublane reduction ----
        # avoids an M=1 MXU matmul that would be pure fill/drain.
        logit = jnp.sum(h * w4[...], axis=0, keepdims=True) + b4[...]   # (1, TB)

        # ---- sigmoid, lane-dense store ----
        p = 1.0 / (1.0 + jnp.exp(-logit))
        prob_ref[...] = p

        # ---- binary cross entropy, stable logit-space form ----
        # (reference's log(p + 1e-6) epsilon dropped per perf review; this is
        #  the numerically exact -[y*log(p) + (1-y)*log(1-p)] computed from z)
        lbl = lbl_ref[...]
        bce = (jnp.maximum(logit, 0.0) - logit * lbl
               + jnp.log(1.0 + jnp.exp(-jnp.abs(logit))))
        # mask out batch-padding lanes so they do not pollute the sum
        lane = jax.lax.broadcasted_iota(jnp.int32, bce.shape, 1)
        valid = (pl.program_id(0) * tb + lane) < total_b
        loss_ref[0, 0] = jnp.sum(jnp.where(valid, bce, 0.0))

    return kernel


def dcn_forward_pallas(all_feature, label, params, *, tb=256):
    """all_feature: (B, 120) f32, label: (B, 1) f32 -> (probs (B,1), loss ())."""
    B = all_feature.shape[0]
    b_pad = ((B + tb - 1) // tb) * tb
    nt = b_pad // tb

    # pad feature dim 120 -> 128, pad batch to a tile multiple, transpose so
    # batch lies on lanes; bf16 halves the feature HBM traffic.
    feat = jnp.pad(all_feature,
                   ((0, b_pad - B), (0, PAD_DIM - all_feature.shape[1])))
    feat_t = feat.astype(jnp.bfloat16).T                      # (128, B_pad)
    lbl_t = jnp.pad(label.astype(jnp.float32), ((0, b_pad - B), (0, 0))).T  # (1, B_pad)

    def bf16(name):
        return params[name].astype(jnp.bfloat16)

    weights = (
        bf16("wd0"), params["bd0"], bf16("wd1"), params["bd1"],
        bf16("wd2"), params["bd2"],
        bf16("w1"), params["b1"], bf16("w2"), params["b2"],
        bf16("w3"), params["b3"],
        params["w4"], params["b4"],        # last layer stays f32 (VPU/XLU path)
    )

    def full_spec(a):
        # whole array, constant block index -> DMA'd once, VMEM-resident
        return pl.BlockSpec(a.shape, lambda i: (0, 0))

    in_specs = [
        pl.BlockSpec((PAD_DIM, tb), lambda i: (0, i)),   # feature tile
        pl.BlockSpec((1, tb), lambda i: (0, i)),         # label tile
    ] + [full_spec(a) for a in weights]

    out_specs = (
        pl.BlockSpec((1, tb), lambda i: (0, i)),                      # probs (lane-dense)
        pl.BlockSpec((1, 1), lambda i: (0, i),
                     memory_space=pltpu.MemorySpace.SMEM),            # per-tile BCE sum
    )

    probs_t, loss_parts = pl.pallas_call(
        _make_kernel(tb, B),
        out_shape=(
            jax.ShapeDtypeStruct((1, b_pad), jnp.float32),
            jax.ShapeDtypeStruct((1, nt), jnp.float32),
        ),
        grid=(nt,),
        in_specs=in_specs,
        out_specs=out_specs,
        compiler_params=pltpu.CompilerParams(
            dimension_semantics=("parallel",)),
    )(feat_t, lbl_t, *weights)

    probs = probs_t[0, :B].reshape(B, 1)
    loss = jnp.sum(loss_parts) / B          # global mean over the TRUE batch size
    return probs, loss


# ------------------------------ JAX glue ------------------------------------

def init_params(key, dim=8, user_num=10, item_num=20, user_gender_num=3,
                user_age_num=8, user_occupation_num=22, item_kind_num=19):
    all_dim = dim * 15
    keys = jax.random.split(key, 16)
    ki = iter(range(16))

    def emb(k, n):
        # torch nn.Embedding default init: N(0, 1)
        return jax.random.normal(k, (n, dim), dtype=jnp.float32)

    def linear(k, fan_in, fan_out, pad_in=0, pad_out=0):
        # torch nn.Linear default init: U(-1/sqrt(fan_in), 1/sqrt(fan_in)),
        # stored torch-style (out_features, in_features); zero-pad so padded
        # feature rows/cols contribute exactly nothing.
        bound = 1.0 / math.sqrt(fan_in)
        k1, k2 = jax.random.split(k)
        w = jax.random.uniform(k1, (fan_out, fan_in), jnp.float32, -bound, bound)
        b = jax.random.uniform(k2, (fan_out,), jnp.float32, -bound, bound)
        if pad_in:
            w = jnp.pad(w, ((0, 0), (0, pad_in)))
        if pad_out:
            w = jnp.pad(w, ((0, pad_out), (0, 0)))
            b = jnp.pad(b, (0, pad_out))
        return w, b.reshape(-1, 1)

    params = {
        "user_id_para": emb(keys[next(ki)], user_num),
        "item_id_para": emb(keys[next(ki)], item_num),
        "age_para": emb(keys[next(ki)], user_age_num),
        "gender_para": emb(keys[next(ki)], user_gender_num),
        "occupation_para": emb(keys[next(ki)], user_occupation_num),
        "kind_para": emb(keys[next(ki)], item_kind_num),
    }
    pad = PAD_DIM - all_dim
    for i in range(3):
        w, b = linear(keys[next(ki)], all_dim, all_dim, pad_in=pad, pad_out=pad)
        params[f"wd{i}"], params[f"bd{i}"] = w, b              # (128,128), (128,1)
    params["w1"], params["b1"] = linear(keys[next(ki)], all_dim, 128, pad_in=pad)
    params["w2"], params["b2"] = linear(keys[next(ki)], 128, 64)
    params["w3"], params["b3"] = linear(keys[next(ki)], 64, 32)
    w4, b4 = linear(keys[next(ki)], 32, 1)                     # (1,32), (1,1)
    params["w4"] = w4.T                                        # (32,1) column
    params["b4"] = b4                                          # (1,1)
    return params


def build_features(params, data):
    """Embedding lookups, kind masking, concat -> (B, 15*dim) feature matrix."""
    # TODO(synk): at large batch the gather + concat could be fused into the
    # kernel via PrefetchScalarGridSpec (tables are only a few KiB) to avoid
    # the all_feature HBM round trip; kept in plain JAX here.
    b = data["userid"].shape[0]
    user_w = params["user_id_para"][data["userid"]]              # (b, 1, dim)
    item_w = params["item_id_para"][data["itemid"]]              # (b, 1, dim)
    age_w = params["age_para"][data["user_age"]]                 # (b, 1, dim)
    gender_w = params["gender_para"][data["gender"]]             # (b, 1, dim)
    occ_w = params["occupation_para"][data["user_occupation"]]   # (b, 1, dim)
    kind_w = params["kind_para"][data["item_kind"]]              # (b, 10, dim)

    # kind index 0 == padding -> zero its embedding
    mask = (data["item_kind"] != 0).astype(kind_w.dtype)[..., None]
    kind_w = kind_w * mask

    all_feature = jnp.concatenate(
        [user_w, item_w, age_w, gender_w, occ_w, kind_w], axis=1)  # (b, 15, dim)
    return all_feature.reshape(b, -1)                               # (b, 120)


def pairwise_auc(probs, labels):
    """Equivalent of sklearn.roc_auc_score for binary labels (ties count 0.5)."""
    # TODO(synk): O(B^2) pairwise form; fine for small eval batches only.
    p = probs.reshape(-1)
    y = labels.reshape(-1)
    pos = (y > 0.5).astype(jnp.float32)
    neg = 1.0 - pos
    diff = p[:, None] - p[None, :]
    wins = (diff > 0).astype(jnp.float32) + 0.5 * (diff == 0).astype(jnp.float32)
    pair_w = pos[:, None] * neg[None, :]
    n_pairs = jnp.sum(pair_w)
    return jnp.sum(wins * pair_w) / jnp.maximum(n_pairs, 1.0)


def forward(params, data):
    all_feature = build_features(params, data)
    label = data["label"].astype(jnp.float32).reshape(-1, 1)
    probs, loss = dcn_forward_pallas(all_feature, label, params)
    auc = pairwise_auc(probs, label)
    return {"loss": loss, "auc": auc, "probs": probs}


# ------------------------------ main ----------------------------------------

if __name__ == "__main__":
    key = jax.random.PRNGKey(0)
    pkey, dkey = jax.random.split(key)

    dim = 8
    user_num, item_num = 10, 20
    user_gender_num, user_age_num, user_occupation_num, item_kind_num = 3, 8, 22, 19
    B = 8

    params = init_params(pkey, dim, user_num, item_num, user_gender_num,
                         user_age_num, user_occupation_num, item_kind_num)

    k1, k2, k3, k4, k5, k6 = jax.random.split(dkey, 6)
    data = {
        "userid": jax.random.randint(k1, (B, 1), 0, user_num),
        "itemid": jax.random.randint(k2, (B, 1), 0, item_num),
        "user_age": jax.random.randint(k3, (B, 1), 0, user_age_num),
        "gender": jax.random.randint(k4, (B, 1), 0, user_gender_num),
        "user_occupation": jax.random.randint(k5, (B, 1), 0, user_occupation_num),
        # 10 kind slots per item; index 0 = padding (masked out)
        "item_kind": jax.random.randint(k6, (B, 10), 0, item_kind_num),
        # alternate labels so both classes are present (AUC well-defined)
        "label": (jnp.arange(B) % 2).astype(jnp.float32).reshape(B, 1),
    }

    out = forward(params, data)
    jax.block_until_ready(out["loss"])
    jax.block_until_ready(out["auc"])
    jax.block_until_ready(out["probs"])
    print("KERNEL_OK")
</pallas_src>

<mosaic_0001>
module attributes {stable_mosaic.version = 11 : i64} {
  func.func @kernel(%arg0: i32, %arg1: memref<128x256xbf16, #tpu.memory_space<vmem>>, %arg2: memref<1x256xf32, #tpu.memory_space<vmem>>, %arg3: memref<128x128xbf16, #tpu.memory_space<vmem>>, %arg4: memref<128x1xf32, #tpu.memory_space<vmem>>, %arg5: memref<128x128xbf16, #tpu.memory_space<vmem>>, %arg6: memref<128x1xf32, #tpu.memory_space<vmem>>, %arg7: memref<128x128xbf16, #tpu.memory_space<vmem>>, %arg8: memref<128x1xf32, #tpu.memory_space<vmem>>, %arg9: memref<128x128xbf16, #tpu.memory_space<vmem>>, %arg10: memref<128x1xf32, #tpu.memory_space<vmem>>, %arg11: memref<64x128xbf16, #tpu.memory_space<vmem>>, %arg12: memref<64x1xf32, #tpu.memory_space<vmem>>, %arg13: memref<32x64xbf16, #tpu.memory_space<vmem>>, %arg14: memref<32x1xf32, #tpu.memory_space<vmem>>, %arg15: memref<32x1xf32, #tpu.memory_space<vmem>>, %arg16: memref<1x1xf32, #tpu.memory_space<vmem>>, %arg17: memref<1x256xf32, #tpu.memory_space<vmem>>, %arg18: memref<1x1xf32, #tpu.memory_space<smem>>) attributes {dimension_semantics = [#tpu.dimension_semantics<parallel>], iteration_bounds = array<i64: 1>, scalar_prefetch = 0 : i64, scratch_operands = 0 : i64, tpu.core_type = #tpu.core_type<tc>, window_params = [{transform_indices = @transform_0, window_bounds = array<i64: 128, 256>}, {transform_indices = @transform_1, window_bounds = array<i64: 1, 256>}, {pipeline_mode = #tpu.pipeline_mode<synchronous>, transform_indices = @transform_2, window_bounds = array<i64: 128, 128>}, {pipeline_mode = #tpu.pipeline_mode<synchronous>, transform_indices = @transform_3, window_bounds = array<i64: 128, 1>}, {pipeline_mode = #tpu.pipeline_mode<synchronous>, transform_indices = @transform_4, window_bounds = array<i64: 128, 128>}, {pipeline_mode = #tpu.pipeline_mode<synchronous>, transform_indices = @transform_5, window_bounds = array<i64: 128, 1>}, {pipeline_mode = #tpu.pipeline_mode<synchronous>, transform_indices = @transform_6, window_bounds = array<i64: 128, 128>}, {pipeline_mode = #tpu.pipeline_mode<synchronous>, transform_indices = @transform_7, window_bounds = array<i64: 128, 1>}, {pipeline_mode = #tpu.pipeline_mode<synchronous>, transform_indices = @transform_8, window_bounds = array<i64: 128, 128>}, {pipeline_mode = #tpu.pipeline_mode<synchronous>, transform_indices = @transform_9, window_bounds = array<i64: 128, 1>}, {pipeline_mode = #tpu.pipeline_mode<synchronous>, transform_indices = @transform_10, window_bounds = array<i64: 64, 128>}, {pipeline_mode = #tpu.pipeline_mode<synchronous>, transform_indices = @transform_11, window_bounds = array<i64: 64, 1>}, {pipeline_mode = #tpu.pipeline_mode<synchronous>, transform_indices = @transform_12, window_bounds = array<i64: 32, 64>}, {pipeline_mode = #tpu.pipeline_mode<synchronous>, transform_indices = @transform_13, window_bounds = array<i64: 32, 1>}, {pipeline_mode = #tpu.pipeline_mode<synchronous>, transform_indices = @transform_14, window_bounds = array<i64: 32, 1>}, {pipeline_mode = #tpu.pipeline_mode<synchronous>, transform_indices = @transform_15, window_bounds = array<i64: 1, 1>}, {transform_indices = @transform_16, window_bounds = array<i64: 1, 256>}, {transform_indices = @transform_17, window_bounds = array<i64: 1, 1>}]} {
    %c0 = arith.constant 0 : index
    %c0_0 = arith.constant 0 : index
    %0 = vector.load %arg1[%c0, %c0_0] : memref<128x256xbf16, #tpu.memory_space<vmem>>, vector<128x256xbf16>
    %1 = arith.extf %0 : vector<128x256xbf16> to vector<128x256xf32>
    %c0_1 = arith.constant 0 : index
    %c0_2 = arith.constant 0 : index
    %2 = vector.load %arg3[%c0_1, %c0_2] : memref<128x128xbf16, #tpu.memory_space<vmem>>, vector<128x128xbf16>
    %3 = arith.truncf %1 : vector<128x256xf32> to vector<128x256xbf16>
    %cst = arith.constant dense<0.000000e+00> : vector<128x256xf32>
    %4 = tpu.matmul %2, %3, %cst {dimension_numbers = #tpu.dot_dimension_numbers<[1], [0], [0], [1], [0, 0, 1, 1], [], []>} : vector<128x128xbf16>, vector<128x256xbf16>, vector<128x256xf32> -> vector<128x256xf32>
    %c0_3 = arith.constant 0 : index
    %c0_4 = arith.constant 0 : index
    %5 = vector.load %arg4[%c0_3, %c0_4] : memref<128x1xf32, #tpu.memory_space<vmem>>, vector<128x1xf32>
    %6 = vector.broadcast %5 : vector<128x1xf32> to vector<128x256xf32>
    %7 = arith.addf %4, %6 : vector<128x256xf32>
    %8 = arith.mulf %1, %7 : vector<128x256xf32>
    %9 = arith.addf %8, %1 : vector<128x256xf32>
    %c0_5 = arith.constant 0 : index
    %c0_6 = arith.constant 0 : index
    %10 = vector.load %arg5[%c0_5, %c0_6] : memref<128x128xbf16, #tpu.memory_space<vmem>>, vector<128x128xbf16>
    %11 = arith.truncf %9 : vector<128x256xf32> to vector<128x256xbf16>
    %cst_7 = arith.constant dense<0.000000e+00> : vector<128x256xf32>
    %12 = tpu.matmul %10, %11, %cst_7 {dimension_numbers = #tpu.dot_dimension_numbers<[1], [0], [0], [1], [0, 0, 1, 1], [], []>} : vector<128x128xbf16>, vector<128x256xbf16>, vector<128x256xf32> -> vector<128x256xf32>
    %c0_8 = arith.constant 0 : index
    %c0_9 = arith.constant 0 : index
    %13 = vector.load %arg6[%c0_8, %c0_9] : memref<128x1xf32, #tpu.memory_space<vmem>>, vector<128x1xf32>
    %14 = vector.broadcast %13 : vector<128x1xf32> to vector<128x256xf32>
    %15 = arith.addf %12, %14 : vector<128x256xf32>
    %16 = arith.mulf %1, %15 : vector<128x256xf32>
    %17 = arith.addf %16, %9 : vector<128x256xf32>
    %c0_10 = arith.constant 0 : index
    %c0_11 = arith.constant 0 : index
    %18 = vector.load %arg7[%c0_10, %c0_11] : memref<128x128xbf16, #tpu.memory_space<vmem>>, vector<128x128xbf16>
    %19 = arith.truncf %17 : vector<128x256xf32> to vector<128x256xbf16>
    %cst_12 = arith.constant dense<0.000000e+00> : vector<128x256xf32>
    %20 = tpu.matmul %18, %19, %cst_12 {dimension_numbers = #tpu.dot_dimension_numbers<[1], [0], [0], [1], [0, 0, 1, 1], [], []>} : vector<128x128xbf16>, vector<128x256xbf16>, vector<128x256xf32> -> vector<128x256xf32>
    %c0_13 = arith.constant 0 : index
    %c0_14 = arith.constant 0 : index
    %21 = vector.load %arg8[%c0_13, %c0_14] : memref<128x1xf32, #tpu.memory_space<vmem>>, vector<128x1xf32>
    %22 = vector.broadcast %21 : vector<128x1xf32> to vector<128x256xf32>
    %23 = arith.addf %20, %22 : vector<128x256xf32>
    %24 = arith.mulf %1, %23 : vector<128x256xf32>
    %25 = arith.addf %24, %17 : vector<128x256xf32>
    %c0_15 = arith.constant 0 : index
    %c0_16 = arith.constant 0 : index
    %26 = vector.load %arg9[%c0_15, %c0_16] : memref<128x128xbf16, #tpu.memory_space<vmem>>, vector<128x128xbf16>
    %27 = arith.truncf %25 : vector<128x256xf32> to vector<128x256xbf16>
    %cst_17 = arith.constant dense<0.000000e+00> : vector<128x256xf32>
    %28 = tpu.matmul %26, %27, %cst_17 {dimension_numbers = #tpu.dot_dimension_numbers<[1], [0], [0], [1], [0, 0, 1, 1], [], []>} : vector<128x128xbf16>, vector<128x256xbf16>, vector<128x256xf32> -> vector<128x256xf32>
    %c0_18 = arith.constant 0 : index
    %c0_19 = arith.constant 0 : index
    %29 = vector.load %arg10[%c0_18, %c0_19] : memref<128x1xf32, #tpu.memory_space<vmem>>, vector<128x1xf32>
    %30 = vector.broadcast %29 : vector<128x1xf32> to vector<128x256xf32>
    %31 = arith.addf %28, %30 : vector<128x256xf32>
    %cst_20 = arith.constant 0.000000e+00 : f32
    %32 = vector.broadcast %cst_20 : f32 to vector<128x256xf32>
    %33 = arith.maximumf %31, %32 : vector<128x256xf32>
    %c0_21 = arith.constant 0 : index
    %c0_22 = arith.constant 0 : index
    %34 = vector.load %arg11[%c0_21, %c0_22] : memref<64x128xbf16, #tpu.memory_space<vmem>>, vector<64x128xbf16>
    %35 = arith.truncf %33 : vector<128x256xf32> to vector<128x256xbf16>
    %cst_23 = arith.constant dense<0.000000e+00> : vector<64x256xf32>
    %36 = tpu.matmul %34, %35, %cst_23 {dimension_numbers = #tpu.dot_dimension_numbers<[1], [0], [0], [1], [0, 0, 1, 1], [], []>} : vector<64x128xbf16>, vector<128x256xbf16>, vector<64x256xf32> -> vector<64x256xf32>
    %c0_24 = arith.constant 0 : index
    %c0_25 = arith.constant 0 : index
    %37 = vector.load %arg12[%c0_24, %c0_25] : memref<64x1xf32, #tpu.memory_space<vmem>>, vector<64x1xf32>
    %38 = vector.broadcast %37 : vector<64x1xf32> to vector<64x256xf32>
    %39 = arith.addf %36, %38 : vector<64x256xf32>
    %cst_26 = arith.constant 0.000000e+00 : f32
    %40 = vector.broadcast %cst_26 : f32 to vector<64x256xf32>
    %41 = arith.maximumf %39, %40 : vector<64x256xf32>
    %c0_27 = arith.constant 0 : index
    %c0_28 = arith.constant 0 : index
    %42 = vector.load %arg13[%c0_27, %c0_28] : memref<32x64xbf16, #tpu.memory_space<vmem>>, vector<32x64xbf16>
    %43 = arith.truncf %41 : vector<64x256xf32> to vector<64x256xbf16>
    %cst_29 = arith.constant dense<0.000000e+00> : vector<32x256xf32>
    %44 = tpu.matmul %42, %43, %cst_29 {dimension_numbers = #tpu.dot_dimension_numbers<[1], [0], [0], [1], [0, 0, 1, 1], [], []>} : vector<32x64xbf16>, vector<64x256xbf16>, vector<32x256xf32> -> vector<32x256xf32>
    %c0_30 = arith.constant 0 : index
    %c0_31 = arith.constant 0 : index
    %45 = vector.load %arg14[%c0_30, %c0_31] : memref<32x1xf32, #tpu.memory_space<vmem>>, vector<32x1xf32>
    %46 = vector.broadcast %45 : vector<32x1xf32> to vector<32x256xf32>
    %47 = arith.addf %44, %46 : vector<32x256xf32>
    %cst_32 = arith.constant 0.000000e+00 : f32
    %48 = vector.broadcast %cst_32 : f32 to vector<32x256xf32>
    %49 = arith.maximumf %47, %48 : vector<32x256xf32>
    %c0_33 = arith.constant 0 : index
    %c0_34 = arith.constant 0 : index
    %50 = vector.load %arg15[%c0_33, %c0_34] : memref<32x1xf32, #tpu.memory_space<vmem>>, vector<32x1xf32>
    %51 = vector.broadcast %50 : vector<32x1xf32> to vector<32x256xf32>
    %52 = arith.mulf %49, %51 : vector<32x256xf32>
    %cst_35 = arith.constant dense<0.000000e+00> : vector<256xf32>
    %53 = vector.multi_reduction <add>, %52, %cst_35 [0] : vector<32x256xf32> to vector<256xf32>
    %54 = vector.shape_cast %53 : vector<256xf32> to vector<1x256xf32>
    %c0_36 = arith.constant 0 : index
    %c0_37 = arith.constant 0 : index
    %55 = vector.load %arg16[%c0_36, %c0_37] : memref<1x1xf32, #tpu.memory_space<vmem>>, vector<1x1xf32>
    %56 = vector.broadcast %55 : vector<1x1xf32> to vector<1x256xf32>
    %57 = arith.addf %54, %56 : vector<1x256xf32>
    %cst_38 = arith.constant 0.000000e+00 : f32
    %58 = vector.broadcast %cst_38 : f32 to vector<1x256xf32>
    %59 = arith.subf %58, %57 : vector<1x256xf32>
    %60 = math.exp %59 : vector<1x256xf32>
    %cst_39 = arith.constant 1.000000e+00 : f32
    %61 = vector.broadcast %cst_39 : f32 to vector<1x256xf32>
    %62 = arith.addf %61, %60 : vector<1x256xf32>
    %cst_40 = arith.constant 1.000000e+00 : f32
    %63 = vector.broadcast %cst_40 : f32 to vector<1x256xf32>
    %64 = arith.divf %63, %62 : vector<1x256xf32>
    %c0_41 = arith.constant 0 : index
    %c0_42 = arith.constant 0 : index
    %65 = vector.load %arg17[%c0_41, %c0_42] : memref<1x256xf32, #tpu.memory_space<vmem>>, vector<1x256xf32>
    tpu.vector_store %arg17[%c0_41, %c0_42], %64 {strides = array<i32>} : memref<1x256xf32, #tpu.memory_space<vmem>>, vector<1x256xf32>,
    %c0_43 = arith.constant 0 : index
    %c0_44 = arith.constant 0 : index
    %66 = vector.load %arg2[%c0_43, %c0_44] : memref<1x256xf32, #tpu.memory_space<vmem>>, vector<1x256xf32>
    %cst_45 = arith.constant 0.000000e+00 : f32
    %67 = vector.broadcast %cst_45 : f32 to vector<1x256xf32>
    %68 = arith.maximumf %57, %67 : vector<1x256xf32>
    %69 = arith.mulf %57, %66 : vector<1x256xf32>
    %70 = arith.subf %68, %69 : vector<1x256xf32>
    %71 = math.absf %57 : vector<1x256xf32>
    %cst_46 = arith.constant 0.000000e+00 : f32
    %72 = vector.broadcast %cst_46 : f32 to vector<1x256xf32>
    %73 = arith.subf %72, %71 : vector<1x256xf32>
    %74 = math.exp %73 : vector<1x256xf32>
    %cst_47 = arith.constant 1.000000e+00 : f32
    %75 = vector.broadcast %cst_47 : f32 to vector<1x256xf32>
    %76 = arith.addf %75, %74 : vector<1x256xf32>
    %77 = math.log %76 : vector<1x256xf32>
    %78 = arith.addf %70, %77 : vector<1x256xf32>
    %79 = tpu.iota {dimensions = array<i32: 1>} : vector<1x256xi32>
    %c256_i32 = arith.constant 256 : i32
    %80 = arith.muli %arg0, %c256_i32 : i32
    %81 = vector.broadcast %80 : i32 to vector<1x256xi32>
    %82 = arith.addi %81, %79 : vector<1x256xi32>
    %c8_i32 = arith.constant 8 : i32
    %83 = vector.broadcast %c8_i32 : i32 to vector<1x256xi32>
    %84 = arith.cmpi slt, %82, %83 : vector<1x256xi32>
    %cst_48 = arith.constant 0.000000e+00 : f32
    %85 = vector.broadcast %cst_48 : f32 to vector<1x256xf32>
    %86 = arith.select %84, %78, %85 : vector<1x256xi1>, vector<1x256xf32>
    %87 = vector.shape_cast %86 : vector<1x256xf32> to vector<1x1x256xf32>
    %cst_49 = arith.constant dense<0.000000e+00> : vector<1xf32>
    %88 = vector.multi_reduction <add>, %87, %cst_49 [1, 2] : vector<1x1x256xf32> to vector<1xf32>
    %89 = vector.shape_cast %88 : vector<1xf32> to vector<1x1x1xf32>
    %90 = vector.extract %89[0, 0, 0] : f32 from vector<1x1x1xf32>
    %c0_50 = arith.constant 0 : index
    %c0_51 = arith.constant 0 : index
    %91 = memref.load %arg18[%c0_50, %c0_51] : memref<1x1xf32, #tpu.memory_space<smem>>
    memref.store %90, %arg18[%c0_50, %c0_51] : memref<1x1xf32, #tpu.memory_space<smem>>
    return
  }
  func.func @transform_0(%arg0: i32) -> (i32, i32) {
    %c0_i32 = arith.constant 0 : i32
    %c0_i32_0 = arith.constant 0 : i32
    return %c0_i32, %arg0 : i32, i32
  }
  func.func @transform_1(%arg0: i32) -> (i32, i32) {
    %c0_i32 = arith.constant 0 : i32
    %c0_i32_0 = arith.constant 0 : i32
    return %c0_i32, %arg0 : i32, i32
  }
  func.func @transform_2(%arg0: i32) -> (i32, i32) {
    %c0_i32 = arith.constant 0 : i32
    %c0_i32_0 = arith.constant 0 : i32
    %c0_i32_1 = arith.constant 0 : i32
    return %c0_i32, %c0_i32_0 : i32, i32
  }
  func.func @transform_3(%arg0: i32) -> (i32, i32) {
    %c0_i32 = arith.constant 0 : i32
    %c0_i32_0 = arith.constant 0 : i32
    %c0_i32_1 = arith.constant 0 : i32
    return %c0_i32, %c0_i32_0 : i32, i32
  }
  func.func @transform_4(%arg0: i32) -> (i32, i32) {
    %c0_i32 = arith.constant 0 : i32
    %c0_i32_0 = arith.constant 0 : i32
    %c0_i32_1 = arith.constant 0 : i32
    return %c0_i32, %c0_i32_0 : i32, i32
  }
  func.func @transform_5(%arg0: i32) -> (i32, i32) {
    %c0_i32 = arith.constant 0 : i32
    %c0_i32_0 = arith.constant 0 : i32
    %c0_i32_1 = arith.constant 0 : i32
    return %c0_i32, %c0_i32_0 : i32, i32
  }
  func.func @transform_6(%arg0: i32) -> (i32, i32) {
    %c0_i32 = arith.constant 0 : i32
    %c0_i32_0 = arith.constant 0 : i32
    %c0_i32_1 = arith.constant 0 : i32
    return %c0_i32, %c0_i32_0 : i32, i32
  }
  func.func @transform_7(%arg0: i32) -> (i32, i32) {
    %c0_i32 = arith.constant 0 : i32
    %c0_i32_0 = arith.constant 0 : i32
    %c0_i32_1 = arith.constant 0 : i32
    return %c0_i32, %c0_i32_0 : i32, i32
  }
  func.func @transform_8(%arg0: i32) -> (i32, i32) {
    %c0_i32 = arith.constant 0 : i32
    %c0_i32_0 = arith.constant 0 : i32
    %c0_i32_1 = arith.constant 0 : i32
    return %c0_i32, %c0_i32_0 : i32, i32
  }
  func.func @transform_9(%arg0: i32) -> (i32, i32) {
    %c0_i32 = arith.constant 0 : i32
    %c0_i32_0 = arith.constant 0 : i32
    %c0_i32_1 = arith.constant 0 : i32
    return %c0_i32, %c0_i32_0 : i32, i32
  }
  func.func @transform_10(%arg0: i32) -> (i32, i32) {
    %c0_i32 = arith.constant 0 : i32
    %c0_i32_0 = arith.constant 0 : i32
    %c0_i32_1 = arith.constant 0 : i32
    return %c0_i32, %c0_i32_0 : i32, i32
  }
  func.func @transform_11(%arg0: i32) -> (i32, i32) {
    %c0_i32 = arith.constant 0 : i32
    %c0_i32_0 = arith.constant 0 : i32
    %c0_i32_1 = arith.constant 0 : i32
    return %c0_i32, %c0_i32_0 : i32, i32
  }
  func.func @transform_12(%arg0: i32) -> (i32, i32) {
    %c0_i32 = arith.constant 0 : i32
    %c0_i32_0 = arith.constant 0 : i32
    %c0_i32_1 = arith.constant 0 : i32
    return %c0_i32, %c0_i32_0 : i32, i32
  }
  func.func @transform_13(%arg0: i32) -> (i32, i32) {
    %c0_i32 = arith.constant 0 : i32
    %c0_i32_0 = arith.constant 0 : i32
    %c0_i32_1 = arith.constant 0 : i32
    return %c0_i32, %c0_i32_0 : i32, i32
  }
  func.func @transform_14(%arg0: i32) -> (i32, i32) {
    %c0_i32 = arith.constant 0 : i32
    %c0_i32_0 = arith.constant 0 : i32
    %c0_i32_1 = arith.constant 0 : i32
    return %c0_i32, %c0_i32_0 : i32, i32
  }
  func.func @transform_15(%arg0: i32) -> (i32, i32) {
    %c0_i32 = arith.constant 0 : i32
    %c0_i32_0 = arith.constant 0 : i32
    %c0_i32_1 = arith.constant 0 : i32
    return %c0_i32, %c0_i32_0 : i32, i32
  }
  func.func @transform_16(%arg0: i32) -> (i32, i32) {
    %c0_i32 = arith.constant 0 : i32
    %c0_i32_0 = arith.constant 0 : i32
    return %c0_i32, %arg0 : i32, i32
  }
  func.func @transform_17(%arg0: i32) -> (i32, i32) {
    %c0_i32 = arith.constant 0 : i32
    %c0_i32_0 = arith.constant 0 : i32
    return %c0_i32, %arg0 : i32, i32
  }
}

</mosaic_0001>

<llo_original>
// kernel: tpu_custom_call.1
$region0: #{tpu_custom_call.1}
  #allocation0 [shape = 'u32[]', space=smem, size = 0x4, offset = 0x4, fixed_abs, tag = 'smem constant byte address 0x4 - core index']
  #allocation1 [shape = 'u32[144,128]{1,0:T(1,128)}', space=vmem, size = 0x12000, scoped, tag = 'internal scratch']
  #allocation2 [shape = 'f32[1,1]{1,0:T(1,128)S(1)}', space=vmem, size = 0x200, scoped, tag = 'scoped memory for tpu_custom_call.1']
  %s0 = inlined_call_operand.vmem [shape: bf16[128,256], index: 0, kind: input, shape index: {}]
  %s1 = inlined_call_operand.vmem [shape: f32[1,256], index: 1, kind: input, shape index: {}]
  %s2 = inlined_call_operand.vmem [shape: bf16[128,128], index: 2, kind: input, shape index: {}]
  %s3 = inlined_call_operand.vmem [shape: f32[128,1], index: 3, kind: input, shape index: {}]
  %s4 = inlined_call_operand.vmem [shape: bf16[128,128], index: 4, kind: input, shape index: {}]
  %s5 = inlined_call_operand.vmem [shape: f32[128,1], index: 5, kind: input, shape index: {}]
  %s6 = inlined_call_operand.vmem [shape: bf16[128,128], index: 6, kind: input, shape index: {}]
  %s7 = inlined_call_operand.vmem [shape: f32[128,1], index: 7, kind: input, shape index: {}]
  %s8 = inlined_call_operand.vmem [shape: bf16[128,128], index: 8, kind: input, shape index: {}]
  %s9 = inlined_call_operand.vmem [shape: f32[128,1], index: 9, kind: input, shape index: {}]
  %s10 = inlined_call_operand.vmem [shape: bf16[64,128], index: 10, kind: input, shape index: {}]
  %s11 = inlined_call_operand.vmem [shape: f32[64,1], index: 11, kind: input, shape index: {}]
  %s12 = inlined_call_operand.vmem [shape: bf16[32,64], index: 12, kind: input, shape index: {}]
  %s13 = inlined_call_operand.vmem [shape: f32[32,1], index: 13, kind: input, shape index: {}]
  %s14 = inlined_call_operand.vmem [shape: f32[32,1], index: 14, kind: input, shape index: {}]
  %s15 = inlined_call_operand.<no memory space> [shape: f32[1,1], index: 15, kind: input, shape index: {}]
  %s16 = inlined_call_operand.hbm [shape: f32[1,256], index: 16, kind: output, shape index: {0}]
  %s17 = inlined_call_operand.hbm [shape: f32[1,1], index: 17, kind: output, shape index: {1}]
  %18 = xla_tuple %s16, %s17
  %s19 = sld [smem:[#allocation0]]
  $region82: #{tpu_custom_call.1} parent=0
    _
  %s21 = ssub.s32 1, %s19
  %s22 = scalar_select 0, %s21, %s19
  %v23 = vstv %s15
  %24 = vst [vmem:[#allocation2] sm:$0x1] %v23
  $region1: #{tpu_custom_call.1} parent=0
    #allocation3 [shape = 'u8[1024]{0}', space=vmem, size = 0x400, scoped, tag = 'output window, operand 0, single buffered']
    #allocation4 [shape = 's32[1]{0}', space=sflag, size = 0x4, scoped, tag = 'scoped memory for tpu_custom_call.1']
    #allocation5 [shape = 's32[1]{0}', space=sflag, size = 0x4, scoped, tag = 'scoped memory for tpu_custom_call.1']
    #allocation6 [shape = 'u8[512]{0}', space=smem, size = 0x200, scoped, tag = 'output window, operand 1, single buffered']
    %25 = vsyncpa [#allocation4], 0
    %26 = vsyncpa [#allocation5], 0
    // Predicated region
    $region2: #{tpu_custom_call.1} parent=1 // pred_check
      _
    $region3: #{tpu_custom_call.1} parent=1 // pred_check_branch
      %28 = sbr.rel (0) target = $region5
    $region4: #{tpu_custom_call.1} parent=1 // pred_region
      _
    $region5: #{tpu_custom_call.1} parent=1 // pred_fallthru
      _
    // Predicated region
    $region6: #{tpu_custom_call.1} parent=1 // pred_check
      _
    $region7: #{tpu_custom_call.1} parent=1 // pred_check_branch
      %30 = sbr.rel (0) target = $region9
    $region8: #{tpu_custom_call.1} parent=1 // pred_region
      _
    $region9: #{tpu_custom_call.1} parent=1 // pred_fallthru
      _
    // Predicated region
    $region10: #{tpu_custom_call.1} parent=1 // pred_check
      _
    $region11: #{tpu_custom_call.1} parent=1 // pred_check_branch
      %32 = sbr.rel (0) target = $region13
    $region12: #{tpu_custom_call.1} parent=1 // pred_region
      _
    $region13: #{tpu_custom_call.1} parent=1 // pred_fallthru
      _
    // Predicated region
    $region14: #{tpu_custom_call.1} parent=1 // pred_check
      _
    $region15: #{tpu_custom_call.1} parent=1 // pred_check_branch
      %34 = sbr.rel (0) target = $region17
    $region16: #{tpu_custom_call.1} parent=1 // pred_region
      _
    $region17: #{tpu_custom_call.1} parent=1 // pred_fallthru
      _
    // Predicated region
    $region18: #{tpu_custom_call.1} parent=1 // pred_check
      _
    $region19: #{tpu_custom_call.1} parent=1 // pred_check_branch
      %36 = sbr.rel (0) target = $region21
    $region20: #{tpu_custom_call.1} parent=1 // pred_region
      _
    $region21: #{tpu_custom_call.1} parent=1 // pred_fallthru
      _
    // Predicated region
    $region22: #{tpu_custom_call.1} parent=1 // pred_check
      _
    $region23: #{tpu_custom_call.1} parent=1 // pred_check_branch
      %38 = sbr.rel (0) target = $region25
    $region24: #{tpu_custom_call.1} parent=1 // pred_region
      _
    $region25: #{tpu_custom_call.1} parent=1 // pred_fallthru
      _
    // Predicated region
    $region26: #{tpu_custom_call.1} parent=1 // pred_check
      _
    $region27: #{tpu_custom_call.1} parent=1 // pred_check_branch
      %40 = sbr.rel (0) target = $region29
    $region28: #{tpu_custom_call.1} parent=1 // pred_region
      _
    $region29: #{tpu_custom_call.1} parent=1 // pred_fallthru
      _
    // Predicated region
    $region30: #{tpu_custom_call.1} parent=1 // pred_check
      _
    $region31: #{tpu_custom_call.1} parent=1 // pred_check_branch
      %42 = sbr.rel (0) target = $region33
    $region32: #{tpu_custom_call.1} parent=1 // pred_region
      _
    $region33: #{tpu_custom_call.1} parent=1 // pred_fallthru
      _
    // Predicated region
    $region34: #{tpu_custom_call.1} parent=1 // pred_check
      _
    $region35: #{tpu_custom_call.1} parent=1 // pred_check_branch
      %44 = sbr.rel (0) target = $region37
    $region36: #{tpu_custom_call.1} parent=1 // pred_region
      _
    $region37: #{tpu_custom_call.1} parent=1 // pred_fallthru
      _
    // Predicated region
    $region38: #{tpu_custom_call.1} parent=1 // pred_check
      _
    $region39: #{tpu_custom_call.1} parent=1 // pred_check_branch
      %46 = sbr.rel (0) target = $region41
    $region40: #{tpu_custom_call.1} parent=1 // pred_region
      _
    $region41: #{tpu_custom_call.1} parent=1 // pred_fallthru
      _
    // Predicated region
    $region42: #{tpu_custom_call.1} parent=1 // pred_check
      _
    $region43: #{tpu_custom_call.1} parent=1 // pred_check_branch
      %48 = sbr.rel (0) target = $region45
    $region44: #{tpu_custom_call.1} parent=1 // pred_region
      _
    $region45: #{tpu_custom_call.1} parent=1 // pred_fallthru
      _
    // Predicated region
    $region46: #{tpu_custom_call.1} parent=1 // pred_check
      _
    $region47: #{tpu_custom_call.1} parent=1 // pred_check_branch
      %50 = sbr.rel (0) target = $region49
    $region48: #{tpu_custom_call.1} parent=1 // pred_region
      _
    $region49: #{tpu_custom_call.1} parent=1 // pred_fallthru
      _
    // Predicated region
    $region50: #{tpu_custom_call.1} parent=1 // pred_check
      _
    $region51: #{tpu_custom_call.1} parent=1 // pred_check_branch
      %52 = sbr.rel (0) target = $region53
    $region52: #{tpu_custom_call.1} parent=1 // pred_region
      _
    $region53: #{tpu_custom_call.1} parent=1 // pred_fallthru
      _
    // Predicated region
    $region54: #{tpu_custom_call.1} parent=1 // pred_check
      _
    $region55: #{tpu_custom_call.1} parent=1 // pred_check_branch
      %54 = sbr.rel (0) target = $region57
    $region56: #{tpu_custom_call.1} parent=1 // pred_region
      _
    $region57: #{tpu_custom_call.1} parent=1 // pred_fallthru
      _
    // Predicated region
    $region58: #{tpu_custom_call.1} parent=1 // pred_check
      _
    $region59: #{tpu_custom_call.1} parent=1 // pred_check_branch
      %56 = sbr.rel (0) target = $region61
    $region60: #{tpu_custom_call.1} parent=1 // pred_region
      _
    $region61: #{tpu_custom_call.1} parent=1 // pred_fallthru
      _
    // Predicated region
    $region62: #{tpu_custom_call.1} parent=1 // pred_check
      _
    $region63: #{tpu_custom_call.1} parent=1 // pred_check_branch
      %58 = sbr.rel (0) target = $region65
    $region64: #{tpu_custom_call.1} parent=1 // pred_region
      _
    $region65: #{tpu_custom_call.1} parent=1 // pred_fallthru
      _
    %v60 = vld [vmem:[%s0] sm:$0xff]
    %v61 = vld [vmem:[%s0 + $0x8] sm:$0xff]
    %v62 = vld [vmem:[%s0 + $0x10] sm:$0xff]
    %v63 = vld [vmem:[%s0 + $0x18] sm:$0xff]
    %v64 = vld [vmem:[%s0 + $0x20] sm:$0xff]
    %v65 = vld [vmem:[%s0 + $0x28] sm:$0xff]
    %v66 = vld [vmem:[%s0 + $0x30] sm:$0xff]
    %v67 = vld [vmem:[%s0 + $0x38] sm:$0xff]
    %v68 = vld [vmem:[%s0 + $0x40] sm:$0xff]
    %v69 = vld [vmem:[%s0 + $0x48] sm:$0xff]
    %v70 = vld [vmem:[%s0 + $0x50] sm:$0xff]
    %v71 = vld [vmem:[%s0 + $0x58] sm:$0xff]
    %v72 = vld [vmem:[%s0 + $0x60] sm:$0xff]
    %v73 = vld [vmem:[%s0 + $0x68] sm:$0xff]
    %v74 = vld [vmem:[%s0 + $0x70] sm:$0xff]
    %v75 = vld [vmem:[%s0 + $0x78] sm:$0xff]
    %v76 = vunpack.c.l.bf16 %v60
    %v77 = vunpack.c.h.bf16 %v60
    %v78 = vunpack.c.l.bf16 %v61
    %v79 = vunpack.c.h.bf16 %v61
    %v80 = vunpack.c.l.bf16 %v62
    %v81 = vunpack.c.h.bf16 %v62
    %v82 = vunpack.c.l.bf16 %v63
    %v83 = vunpack.c.h.bf16 %v63
    %v84 = vunpack.c.l.bf16 %v64
    %v85 = vunpack.c.h.bf16 %v64
    %v86 = vunpack.c.l.bf16 %v65
    %v87 = vunpack.c.h.bf16 %v65
    %v88 = vunpack.c.l.bf16 %v66
    %v89 = vunpack.c.h.bf16 %v66
    %v90 = vunpack.c.l.bf16 %v67
    %v91 = vunpack.c.h.bf16 %v67
    %v92 = vunpack.c.l.bf16 %v68
    %v93 = vunpack.c.h.bf16 %v68
    %v94 = vunpack.c.l.bf16 %v69
    %v95 = vunpack.c.h.bf16 %v69
    %v96 = vunpack.c.l.bf16 %v70
    %v97 = vunpack.c.h.bf16 %v70
    %v98 = vunpack.c.l.bf16 %v71
    %v99 = vunpack.c.h.bf16 %v71
    %v100 = vunpack.c.l.bf16 %v72
    %v101 = vunpack.c.h.bf16 %v72
    %v102 = vunpack.c.l.bf16 %v73
    %v103 = vunpack.c.h.bf16 %v73
    %v104 = vunpack.c.l.bf16 %v74
    %v105 = vunpack.c.h.bf16 %v74
    %v106 = vunpack.c.l.bf16 %v75
    %v107 = vunpack.c.h.bf16 %v75
    %v108 = vld [vmem:[%s2] sm:$0xf]
    %v109 = vld [vmem:[%s2 + $0x4] sm:$0xf]
    %v110 = vld [vmem:[%s2 + $0x8] sm:$0xf]
    %v111 = vld [vmem:[%s2 + $0xc] sm:$0xf]
    %v112 = vld [vmem:[%s2 + $0x10] sm:$0xf]
    %v113 = vld [vmem:[%s2 + $0x14] sm:$0xf]
    %v114 = vld [vmem:[%s2 + $0x18] sm:$0xf]
    %v115 = vld [vmem:[%s2 + $0x1c] sm:$0xf]
    %v116 = vld [vmem:[%s2 + $0x20] sm:$0xf]
    %v117 = vld [vmem:[%s2 + $0x24] sm:$0xf]
    %v118 = vld [vmem:[%s2 + $0x28] sm:$0xf]
    %v119 = vld [vmem:[%s2 + $0x2c] sm:$0xf]
    %v120 = vld [vmem:[%s2 + $0x30] sm:$0xf]
    %v121 = vld [vmem:[%s2 + $0x34] sm:$0xf]
    %v122 = vld [vmem:[%s2 + $0x38] sm:$0xf]
    %v123 = vld [vmem:[%s2 + $0x3c] sm:$0xf]
    %v124 = vld [vmem:[%s3] sm:$0xff]
    %v125 = vld [vmem:[%s3 + $0x8] sm:$0xff]
    %v126 = vld [vmem:[%s3 + $0x10] sm:$0xff]
    %v127 = vld [vmem:[%s3 + $0x18] sm:$0xff]
    %v128 = vld [vmem:[%s3 + $0x20] sm:$0xff]
    %v129 = vld [vmem:[%s3 + $0x28] sm:$0xff]
    %v130 = vld [vmem:[%s3 + $0x30] sm:$0xff]
    %v131 = vld [vmem:[%s3 + $0x38] sm:$0xff]
    %v132 = vld [vmem:[%s3 + $0x40] sm:$0xff]
    %v133 = vld [vmem:[%s3 + $0x48] sm:$0xff]
    %v134 = vld [vmem:[%s3 + $0x50] sm:$0xff]
    %v135 = vld [vmem:[%s3 + $0x58] sm:$0xff]
    %v136 = vld [vmem:[%s3 + $0x60] sm:$0xff]
    %v137 = vld [vmem:[%s3 + $0x68] sm:$0xff]
    %v138 = vld [vmem:[%s3 + $0x70] sm:$0xff]
    %v139 = vld [vmem:[%s3 + $0x78] sm:$0xff]
    %141 = vset.pattern.permute.xlu0 0
    %142 = vperm.xlu0 %141, %v124
    %v143 = vpop.permute.xlu0 %142
    %146 = vset.pattern.permute.xlu0 0
    %147 = vperm.xlu0 %146, %v125
    %v148 = vpop.permute.xlu0 %147
    %151 = vset.pattern.permute.xlu0 0
    %152 = vperm.xlu0 %151, %v126
    %v153 = vpop.permute.xlu0 %152
    %156 = vset.pattern.permute.xlu0 0
    %157 = vperm.xlu0 %156, %v127
    %v158 = vpop.permute.xlu0 %157
    %161 = vset.pattern.permute.xlu0 0
    %162 = vperm.xlu0 %161, %v128
    %v163 = vpop.permute.xlu0 %162
    %166 = vset.pattern.permute.xlu0 0
    %167 = vperm.xlu0 %166, %v129
    %v168 = vpop.permute.xlu0 %167
    %171 = vset.pattern.permute.xlu0 0
    %172 = vperm.xlu0 %171, %v130
    %v173 = vpop.permute.xlu0 %172
    %176 = vset.pattern.permute.xlu0 0
    %177 = vperm.xlu0 %176, %v131
    %v178 = vpop.permute.xlu0 %177
    %181 = vset.pattern.permute.xlu0 0
    %182 = vperm.xlu0 %181, %v132
    %v183 = vpop.permute.xlu0 %182
    %186 = vset.pattern.permute.xlu0 0
    %187 = vperm.xlu0 %186, %v133
    %v188 = vpop.permute.xlu0 %187
    %191 = vset.pattern.permute.xlu0 0
    %192 = vperm.xlu0 %191, %v134
    %v193 = vpop.permute.xlu0 %192
    %196 = vset.pattern.permute.xlu0 0
    %197 = vperm.xlu0 %196, %v135
    %v198 = vpop.permute.xlu0 %197
    %201 = vset.pattern.permute.xlu0 0
    %202 = vperm.xlu0 %201, %v136
    %v203 = vpop.permute.xlu0 %202
    %206 = vset.pattern.permute.xlu0 0
    %207 = vperm.xlu0 %206, %v137
    %v208 = vpop.permute.xlu0 %207
    %211 = vset.pattern.permute.xlu0 0
    %212 = vperm.xlu0 %211, %v138
    %v213 = vpop.permute.xlu0 %212
    %216 = vset.pattern.permute.xlu0 0
    %217 = vperm.xlu0 %216, %v139
    %v218 = vpop.permute.xlu0 %217
    %v236 = vunpack.c.l.b16 %v108
    %v237 = vunpack.c.l.b16 %v109
    %v238 = vunpack.c.l.b16 %v110
    %v239 = vunpack.c.l.b16 %v111
    %v240 = vunpack.c.l.b16 %v112
    %v241 = vunpack.c.l.b16 %v113
    %v242 = vunpack.c.l.b16 %v114
    %v243 = vunpack.c.l.b16 %v115
    %v244 = vunpack.c.l.b16 %v116
    %v245 = vunpack.c.l.b16 %v117
    %v246 = vunpack.c.l.b16 %v118
    %v247 = vunpack.c.l.b16 %v119
    %v248 = vunpack.c.l.b16 %v120
    %v249 = vunpack.c.l.b16 %v121
    %v250 = vunpack.c.l.b16 %v122
    %v251 = vunpack.c.l.b16 %v123
    %v252 = vpack.c.b16 %v237, %v236
    %v253 = vpack.c.b16 %v239, %v238
    %v254 = vpack.c.b16 %v241, %v240
    %v255 = vpack.c.b16 %v243, %v242
    %v256 = vpack.c.b16 %v245, %v244
    %v257 = vpack.c.b16 %v247, %v246
    %v258 = vpack.c.b16 %v249, %v248
    %v259 = vpack.c.b16 %v251, %v250
    %v284 = vunpack.c.l.b16 %v60
    %v285 = vunpack.c.h.b16 %v60
    %v286 = vunpack.c.l.b16 %v61
    %v287 = vunpack.c.h.b16 %v61
    %v288 = vunpack.c.l.b16 %v62
    %v289 = vunpack.c.h.b16 %v62
    %v290 = vunpack.c.l.b16 %v63
    %v291 = vunpack.c.h.b16 %v63
    %v292 = vunpack.c.l.b16 %v64
    %v293 = vunpack.c.h.b16 %v64
    %v294 = vunpack.c.l.b16 %v65
    %v295 = vunpack.c.h.b16 %v65
    %v296 = vunpack.c.l.b16 %v66
    %v297 = vunpack.c.h.b16 %v66
    %v298 = vunpack.c.l.b16 %v67
    %v299 = vunpack.c.h.b16 %v67
    %v300 = vunpack.c.l.b16 %v68
    %v301 = vunpack.c.h.b16 %v68
    %v302 = vunpack.c.l.b16 %v69
    %v303 = vunpack.c.h.b16 %v69
    %v304 = vunpack.c.l.b16 %v70
    %v305 = vunpack.c.h.b16 %v70
    %v306 = vunpack.c.l.b16 %v71
    %v307 = vunpack.c.h.b16 %v71
    %v308 = vunpack.c.l.b16 %v72
    %v309 = vunpack.c.h.b16 %v72
    %v310 = vunpack.c.l.b16 %v73
    %v311 = vunpack.c.h.b16 %v73
    %v312 = vunpack.c.l.b16 %v74
    %v313 = vunpack.c.h.b16 %v74
    %v314 = vunpack.c.l.b16 %v75
    %v315 = vunpack.c.h.b16 %v75
    %v316 = vpack.c.b16 %v286, %v284
    %v317 = vpack.c.b16 %v287, %v285
    %v318 = vpack.c.b16 %v290, %v288
    %v319 = vpack.c.b16 %v291, %v289
    %v320 = vpack.c.b16 %v294, %v292
    %v321 = vpack.c.b16 %v295, %v293
    %v322 = vpack.c.b16 %v298, %v296
    %v323 = vpack.c.b16 %v299, %v297
    %v324 = vpack.c.b16 %v302, %v300
    %v325 = vpack.c.b16 %v303, %v301
    %v326 = vpack.c.b16 %v306, %v304
    %v327 = vpack.c.b16 %v307, %v305
    %v328 = vpack.c.b16 %v310, %v308
    %v329 = vpack.c.b16 %v311, %v309
    %v330 = vpack.c.b16 %v314, %v312
    %v331 = vpack.c.b16 %v315, %v313
    %348 = vmatprep.subr.bf16.mxu0 %v331
    %349 = vmatpush1.bf16.msra.mxu0 %v330
    %350 = vmatprep.subr.bf16.mxu0 %v329
    %351 = vmatpush1.bf16.msra.mxu0 %v328
    %352 = vmatprep.subr.bf16.mxu0 %v327
    %353 = vmatpush1.bf16.msra.mxu0 %v326
    %354 = vmatprep.subr.bf16.mxu0 %v325
    %355 = vmatpush1.bf16.msra.mxu0 %v324
    %356 = vmatprep.subr.bf16.mxu0 %v323
    %357 = vmatpush1.bf16.msra.mxu0 %v322
    %358 = vmatprep.subr.bf16.mxu0 %v321
    %359 = vmatpush1.bf16.msra.mxu0 %v320
    %360 = vmatprep.subr.bf16.mxu0 %v319
    %361 = vmatpush1.bf16.msra.mxu0 %v318
    %362 = vmatprep.subr.bf16.mxu0 %v317
    %363 = vmatpush1.bf16.msra.mxu0 %v316
    %364 = vmatprep.subr.bf16.mxu0 0
    %365 = vmatpush2.bf16.msra.mxu0 0
    %366 = vmatprep.subr.bf16.mxu0 0
    %367 = vmatpush2.bf16.msra.mxu0 0
    %368 = vmatprep.subr.bf16.mxu0 0
    %369 = vmatpush2.bf16.msra.mxu0 0
    %370 = vmatprep.subr.bf16.mxu0 0
    %371 = vmatpush2.bf16.msra.mxu0 0
    %372 = vmatprep.subr.bf16.mxu0 0
    %373 = vmatpush2.bf16.msra.mxu0 0
    %374 = vmatprep.subr.bf16.mxu0 0
    %375 = vmatpush2.bf16.msra.mxu0 0
    %376 = vmatprep.subr.bf16.mxu0 0
    %377 = vmatpush2.bf16.msra.mxu0 0
    %378 = vmatprep.subr.bf16.mxu0 0
    %379 = vmatpush2.bf16.msra.mxu0 0
    %380 = vmatprep.mubr.bf16.mxu0 0
    %381 = vmatmul.mubr.bf16.gmra.mxu0 %v252
    %v382 = vpop.f32.mrf.mxu0
    %v383 = vadd.f32 %v143, %v382
    %v384 = vpop.f32.mrf.mxu0
    %v385 = vadd.f32 %v143, %v384
    %v386 = vpop.f32.mrf.mxu0
    %v387 = vadd.f32 %v148, %v386
    %v388 = vpop.f32.mrf.mxu0
    %v389 = vadd.f32 %v148, %v388
    %390 = vmatprep.mubr.bf16.mxu0 0
    %391 = vmatmul.mubr.bf16.gmra.mxu0 %v253
    %v392 = vpop.f32.mrf.mxu0
    %v393 = vadd.f32 %v153, %v392
    %v394 = vpop.f32.mrf.mxu0
    %v395 = vadd.f32 %v153, %v394
    %v396 = vpop.f32.mrf.mxu0
    %v397 = vadd.f32 %v158, %v396
    %v398 = vpop.f32.mrf.mxu0
    %v399 = vadd.f32 %v158, %v398
    %400 = vmatprep.mubr.bf16.mxu0 0
    %401 = vmatmul.mubr.bf16.gmra.mxu0 %v254
    %v402 = vpop.f32.mrf.mxu0
    %v403 = vadd.f32 %v163, %v402
    %v404 = vpop.f32.mrf.mxu0
    %v405 = vadd.f32 %v163, %v404
    %v406 = vpop.f32.mrf.mxu0
    %v407 = vadd.f32 %v168, %v406
    %v408 = vpop.f32.mrf.mxu0
    %v409 = vadd.f32 %v168, %v408
    %410 = vmatprep.mubr.bf16.mxu0 0
    %411 = vmatmul.mubr.bf16.gmra.mxu0 %v255
    %v412 = vpop.f32.mrf.mxu0
    %v413 = vadd.f32 %v173, %v412
    %v414 = vpop.f32.mrf.mxu0
    %v415 = vadd.f32 %v173, %v414
    %v416 = vpop.f32.mrf.mxu0
    %v417 = vadd.f32 %v178, %v416
    %v418 = vpop.f32.mrf.mxu0
    %v419 = vadd.f32 %v178, %v418
    %420 = vmatprep.mubr.bf16.mxu0 0
    %421 = vmatmul.mubr.bf16.gmra.mxu0 %v256
    %v422 = vpop.f32.mrf.mxu0
    %v423 = vadd.f32 %v183, %v422
    %v424 = vpop.f32.mrf.mxu0
    %v425 = vadd.f32 %v183, %v424
    %v426 = vpop.f32.mrf.mxu0
    %v427 = vadd.f32 %v188, %v426
    %v428 = vpop.f32.mrf.mxu0
    %v429 = vadd.f32 %v188, %v428
    %430 = vmatprep.mubr.bf16.mxu0 0
    %431 = vmatmul.mubr.bf16.gmra.mxu0 %v257
    %v432 = vpop.f32.mrf.mxu0
    %v433 = vadd.f32 %v193, %v432
    %v434 = vpop.f32.mrf.mxu0
    %v435 = vadd.f32 %v193, %v434
    %v436 = vpop.f32.mrf.mxu0
    %v437 = vadd.f32 %v198, %v436
    %v438 = vpop.f32.mrf.mxu0
    %v439 = vadd.f32 %v198, %v438
    %440 = vmatprep.mubr.bf16.mxu0 0
    %441 = vmatmul.mubr.bf16.gmra.mxu0 %v258
    %v442 = vpop.f32.mrf.mxu0
    %v443 = vadd.f32 %v203, %v442
    %v444 = vpop.f32.mrf.mxu0
    %v445 = vadd.f32 %v203, %v444
    %v446 = vpop.f32.mrf.mxu0
    %v447 = vadd.f32 %v208, %v446
    %v448 = vpop.f32.mrf.mxu0
    %v449 = vadd.f32 %v208, %v448
    %450 = vmatprep.mubr.bf16.mxu0 0
    %451 = vmatmul.mubr.bf16.gmra.mxu0 %v259
    %v452 = vpop.f32.mrf.mxu0
    %v453 = vadd.f32 %v213, %v452
    %v454 = vpop.f32.mrf.mxu0
    %v455 = vadd.f32 %v213, %v454
    %v456 = vpop.f32.mrf.mxu0
    %v457 = vadd.f32 %v218, %v456
    %v458 = vpop.f32.mrf.mxu0
    %v459 = vadd.f32 %v218, %v458
    %460 = vdwg.mxu0
    %v461 = vmul.f32 %v76, %v383
    %v462 = vmul.f32 %v77, %v385
    %v463 = vmul.f32 %v78, %v387
    %v464 = vmul.f32 %v79, %v389
    %v465 = vmul.f32 %v80, %v393
    %v466 = vmul.f32 %v81, %v395
    %v467 = vmul.f32 %v82, %v397
    %v468 = vmul.f32 %v83, %v399
    %v469 = vmul.f32 %v84, %v403
    %v470 = vmul.f32 %v85, %v405
    %v471 = vmul.f32 %v86, %v407
    %v472 = vmul.f32 %v87, %v409
    %v473 = vmul.f32 %v88, %v413
    %v474 = vmul.f32 %v89, %v415
    %v475 = vmul.f32 %v90, %v417
    %v476 = vmul.f32 %v91, %v419
    %v477 = vmul.f32 %v92, %v423
    %v478 = vmul.f32 %v93, %v425
    %v479 = vmul.f32 %v94, %v427
    %v480 = vmul.f32 %v95, %v429
    %v481 = vmul.f32 %v96, %v433
    %v482 = vmul.f32 %v97, %v435
    %v483 = vmul.f32 %v98, %v437
    %v484 = vmul.f32 %v99, %v439
    %v485 = vmul.f32 %v100, %v443
    %v486 = vmul.f32 %v101, %v445
    %v487 = vmul.f32 %v102, %v447
    %v488 = vmul.f32 %v103, %v449
    %v489 = vmul.f32 %v104, %v453
    %v490 = vmul.f32 %v105, %v455
    %v491 = vmul.f32 %v106, %v457
    %v492 = vmul.f32 %v107, %v459
    %v493 = vadd.f32 %v461, %v76
    %v494 = vadd.f32 %v462, %v77
    %v495 = vadd.f32 %v463, %v78
    %v496 = vadd.f32 %v464, %v79
    %v497 = vadd.f32 %v465, %v80
    %v498 = vadd.f32 %v466, %v81
    %v499 = vadd.f32 %v467, %v82
    %v500 = vadd.f32 %v468, %v83
    %v501 = vadd.f32 %v469, %v84
    %v502 = vadd.f32 %v470, %v85
    %v503 = vadd.f32 %v471, %v86
    %v504 = vadd.f32 %v472, %v87
    %v505 = vadd.f32 %v473, %v88
    %v506 = vadd.f32 %v474, %v89
    %v507 = vadd.f32 %v475, %v90
    %v508 = vadd.f32 %v476, %v91
    %v509 = vadd.f32 %v477, %v92
    %v510 = vadd.f32 %v478, %v93
    %v511 = vadd.f32 %v479, %v94
    %v512 = vadd.f32 %v480, %v95
    %v513 = vadd.f32 %v481, %v96
    %v514 = vadd.f32 %v482, %v97
    %v515 = vadd.f32 %v483, %v98
    %v516 = vadd.f32 %v484, %v99
    %v517 = vadd.f32 %v485, %v100
    %v518 = vadd.f32 %v486, %v101
    %v519 = vadd.f32 %v487, %v102
    %v520 = vadd.f32 %v488, %v103
    %v521 = vadd.f32 %v489, %v104
    %v522 = vadd.f32 %v490, %v105
    %v523 = vadd.f32 %v491, %v106
    %v524 = vadd.f32 %v492, %v107
    %v525 = vld [vmem:[%s4] sm:$0xf]
    %v526 = vld [vmem:[%s4 + $0x4] sm:$0xf]
    %v527 = vld [vmem:[%s4 + $0x8] sm:$0xf]
    %v528 = vld [vmem:[%s4 + $0xc] sm:$0xf]
    %v529 = vld [vmem:[%s4 + $0x10] sm:$0xf]
    %v530 = vld [vmem:[%s4 + $0x14] sm:$0xf]
    %v531 = vld [vmem:[%s4 + $0x18] sm:$0xf]
    %v532 = vld [vmem:[%s4 + $0x1c] sm:$0xf]
    %v533 = vld [vmem:[%s4 + $0x20] sm:$0xf]
    %v534 = vld [vmem:[%s4 + $0x24] sm:$0xf]
    %v535 = vld [vmem:[%s4 + $0x28] sm:$0xf]
    %v536 = vld [vmem:[%s4 + $0x2c] sm:$0xf]
    %v537 = vld [vmem:[%s4 + $0x30] sm:$0xf]
    %v538 = vld [vmem:[%s4 + $0x34] sm:$0xf]
    %v539 = vld [vmem:[%s4 + $0x38] sm:$0xf]
    %v540 = vld [vmem:[%s4 + $0x3c] sm:$0xf]
    %v541 = vpack.c.bf16 %v495, %v493
    %v542 = vpack.c.bf16 %v496, %v494
    %v543 = vpack.c.bf16 %v499, %v497
    %v544 = vpack.c.bf16 %v500, %v498
    %v545 = vpack.c.bf16 %v503, %v501
    %v546 = vpack.c.bf16 %v504, %v502
    %v547 = vpack.c.bf16 %v507, %v505
    %v548 = vpack.c.bf16 %v508, %v506
    %v549 = vpack.c.bf16 %v511, %v509
    %v550 = vpack.c.bf16 %v512, %v510
    %v551 = vpack.c.bf16 %v515, %v513
    %v552 = vpack.c.bf16 %v516, %v514
    %v553 = vpack.c.bf16 %v519, %v517
    %v554 = vpack.c.bf16 %v520, %v518
    %v555 = vpack.c.bf16 %v523, %v521
    %v556 = vpack.c.bf16 %v524, %v522
    %v557 = vld [vmem:[%s5] sm:$0xff]
    %v558 = vld [vmem:[%s5 + $0x8] sm:$0xff]
    %v559 = vld [vmem:[%s5 + $0x10] sm:$0xff]
    %v560 = vld [vmem:[%s5 + $0x18] sm:$0xff]
    %v561 = vld [vmem:[%s5 + $0x20] sm:$0xff]
    %v562 = vld [vmem:[%s5 + $0x28] sm:$0xff]
    %v563 = vld [vmem:[%s5 + $0x30] sm:$0xff]
    %v564 = vld [vmem:[%s5 + $0x38] sm:$0xff]
    %v565 = vld [vmem:[%s5 + $0x40] sm:$0xff]
    %v566 = vld [vmem:[%s5 + $0x48] sm:$0xff]
    %v567 = vld [vmem:[%s5 + $0x50] sm:$0xff]
    %v568 = vld [vmem:[%s5 + $0x58] sm:$0xff]
    %v569 = vld [vmem:[%s5 + $0x60] sm:$0xff]
    %v570 = vld [vmem:[%s5 + $0x68] sm:$0xff]
    %v571 = vld [vmem:[%s5 + $0x70] sm:$0xff]
    %v572 = vld [vmem:[%s5 + $0x78] sm:$0xff]
    %574 = vset.pattern.permute.xlu0 0
    %575 = vperm.xlu0 %574, %v557
    %v576 = vpop.permute.xlu0 %575
    %579 = vset.pattern.permute.xlu0 0
    %580 = vperm.xlu0 %579, %v558
    %v581 = vpop.permute.xlu0 %580
    %584 = vset.pattern.permute.xlu0 0
    %585 = vperm.xlu0 %584, %v559
    %v586 = vpop.permute.xlu0 %585
    %589 = vset.pattern.permute.xlu0 0
    %590 = vperm.xlu0 %589, %v560
    %v591 = vpop.permute.xlu0 %590
    %594 = vset.pattern.permute.xlu0 0
    %595 = vperm.xlu0 %594, %v561
    %v596 = vpop.permute.xlu0 %595
    %599 = vset.pattern.permute.xlu0 0
    %600 = vperm.xlu0 %599, %v562
    %v601 = vpop.permute.xlu0 %600
    %604 = vset.pattern.permute.xlu0 0
    %605 = vperm.xlu0 %604, %v563
    %v606 = vpop.permute.xlu0 %605
    %609 = vset.pattern.permute.xlu0 0
    %610 = vperm.xlu0 %609, %v564
    %v611 = vpop.permute.xlu0 %610
    %614 = vset.pattern.permute.xlu0 0
    %615 = vperm.xlu0 %614, %v565
    %v616 = vpop.permute.xlu0 %615
    %619 = vset.pattern.permute.xlu0 0
    %620 = vperm.xlu0 %619, %v566
    %v621 = vpop.permute.xlu0 %620
    %624 = vset.pattern.permute.xlu0 0
    %625 = vperm.xlu0 %624, %v567
    %v626 = vpop.permute.xlu0 %625
    %629 = vset.pattern.permute.xlu0 0
    %630 = vperm.xlu0 %629, %v568
    %v631 = vpop.permute.xlu0 %630
    %634 = vset.pattern.permute.xlu0 0
    %635 = vperm.xlu0 %634, %v569
    %v636 = vpop.permute.xlu0 %635
    %639 = vset.pattern.permute.xlu0 0
    %640 = vperm.xlu0 %639, %v570
    %v641 = vpop.permute.xlu0 %640
    %644 = vset.pattern.permute.xlu0 0
    %645 = vperm.xlu0 %644, %v571
    %v646 = vpop.permute.xlu0 %645
    %649 = vset.pattern.permute.xlu0 0
    %650 = vperm.xlu0 %649, %v572
    %v651 = vpop.permute.xlu0 %650
    %v669 = vunpack.c.l.b16 %v525
    %v670 = vunpack.c.l.b16 %v526
    %v671 = vunpack.c.l.b16 %v527
    %v672 = vunpack.c.l.b16 %v528
    %v673 = vunpack.c.l.b16 %v529
    %v674 = vunpack.c.l.b16 %v530
    %v675 = vunpack.c.l.b16 %v531
    %v676 = vunpack.c.l.b16 %v532
    %v677 = vunpack.c.l.b16 %v533
    %v678 = vunpack.c.l.b16 %v534
    %v679 = vunpack.c.l.b16 %v535
    %v680 = vunpack.c.l.b16 %v536
    %v681 = vunpack.c.l.b16 %v537
    %v682 = vunpack.c.l.b16 %v538
    %v683 = vunpack.c.l.b16 %v539
    %v684 = vunpack.c.l.b16 %v540
    %v685 = vpack.c.b16 %v670, %v669
    %v686 = vpack.c.b16 %v672, %v671
    %v687 = vpack.c.b16 %v674, %v673
    %v688 = vpack.c.b16 %v676, %v675
    %v689 = vpack.c.b16 %v678, %v677
    %v690 = vpack.c.b16 %v680, %v679
    %v691 = vpack.c.b16 %v682, %v681
    %v692 = vpack.c.b16 %v684, %v683
    %701 = vmatprep.subr.bf16.mxu0 %v556
    %702 = vmatpush1.bf16.msra.mxu0 %v555
    %703 = vmatprep.subr.bf16.mxu0 %v554
    %704 = vmatpush1.bf16.msra.mxu0 %v553
    %705 = vmatprep.subr.bf16.mxu0 %v552
    %706 = vmatpush1.bf16.msra.mxu0 %v551
    %707 = vmatprep.subr.bf16.mxu0 %v550
    %708 = vmatpush1.bf16.msra.mxu0 %v549
    %709 = vmatprep.subr.bf16.mxu0 %v548
    %710 = vmatpush1.bf16.msra.mxu0 %v547
    %711 = vmatprep.subr.bf16.mxu0 %v546
    %712 = vmatpush1.bf16.msra.mxu0 %v545
    %713 = vmatprep.subr.bf16.mxu0 %v544
    %714 = vmatpush1.bf16.msra.mxu0 %v543
    %715 = vmatprep.subr.bf16.mxu0 %v542
    %716 = vmatpush1.bf16.msra.mxu0 %v541
    %717 = vmatprep.subr.bf16.mxu0 0
    %718 = vmatpush2.bf16.msra.mxu0 0
    %719 = vmatprep.subr.bf16.mxu0 0
    %720 = vmatpush2.bf16.msra.mxu0 0
    %721 = vmatprep.subr.bf16.mxu0 0
    %722 = vmatpush2.bf16.msra.mxu0 0
    %723 = vmatprep.subr.bf16.mxu0 0
    %724 = vmatpush2.bf16.msra.mxu0 0
    %725 = vmatprep.subr.bf16.mxu0 0
    %726 = vmatpush2.bf16.msra.mxu0 0
    %727 = vmatprep.subr.bf16.mxu0 0
    %728 = vmatpush2.bf16.msra.mxu0 0
    %729 = vmatprep.subr.bf16.mxu0 0
    %730 = vmatpush2.bf16.msra.mxu0 0
    %731 = vmatprep.subr.bf16.mxu0 0
    %732 = vmatpush2.bf16.msra.mxu0 0
    %733 = vmatprep.mubr.bf16.mxu0 0
    %734 = vmatmul.mubr.bf16.gmra.mxu0 %v685
    %v735 = vpop.f32.mrf.mxu0
    %v736 = vadd.f32 %v576, %v735
    %v737 = vpop.f32.mrf.mxu0
    %v738 = vadd.f32 %v576, %v737
    %v739 = vpop.f32.mrf.mxu0
    %v740 = vadd.f32 %v581, %v739
    %v741 = vpop.f32.mrf.mxu0
    %v742 = vadd.f32 %v581, %v741
    %743 = vmatprep.mubr.bf16.mxu0 0
    %744 = vmatmul.mubr.bf16.gmra.mxu0 %v686
    %v745 = vpop.f32.mrf.mxu0
    %v746 = vadd.f32 %v586, %v745
    %v747 = vpop.f32.mrf.mxu0
    %v748 = vadd.f32 %v586, %v747
    %v749 = vpop.f32.mrf.mxu0
    %v750 = vadd.f32 %v591, %v749
    %v751 = vpop.f32.mrf.mxu0
    %v752 = vadd.f32 %v591, %v751
    %753 = vmatprep.mubr.bf16.mxu0 0
    %754 = vmatmul.mubr.bf16.gmra.mxu0 %v687
    %v755 = vpop.f32.mrf.mxu0
    %v756 = vadd.f32 %v596, %v755
    %v757 = vpop.f32.mrf.mxu0
    %v758 = vadd.f32 %v596, %v757
    %v759 = vpop.f32.mrf.mxu0
    %v760 = vadd.f32 %v601, %v759
    %v761 = vpop.f32.mrf.mxu0
    %v762 = vadd.f32 %v601, %v761
    %763 = vmatprep.mubr.bf16.mxu0 0
    %764 = vmatmul.mubr.bf16.gmra.mxu0 %v688
    %v765 = vpop.f32.mrf.mxu0
    %v766 = vadd.f32 %v606, %v765
    %v767 = vpop.f32.mrf.mxu0
    %v768 = vadd.f32 %v606, %v767
    %v769 = vpop.f32.mrf.mxu0
    %v770 = vadd.f32 %v611, %v769
    %v771 = vpop.f32.mrf.mxu0
    %v772 = vadd.f32 %v611, %v771
    %773 = vmatprep.mubr.bf16.mxu0 0
    %774 = vmatmul.mubr.bf16.gmra.mxu0 %v689
    %v775 = vpop.f32.mrf.mxu0
    %v776 = vadd.f32 %v616, %v775
    %v777 = vpop.f32.mrf.mxu0
    %v778 = vadd.f32 %v616, %v777
    %v779 = vpop.f32.mrf.mxu0
    %v780 = vadd.f32 %v621, %v779
    %v781 = vpop.f32.mrf.mxu0
    %v782 = vadd.f32 %v621, %v781
    %783 = vmatprep.mubr.bf16.mxu0 0
    %784 = vmatmul.mubr.bf16.gmra.mxu0 %v690
    %v785 = vpop.f32.mrf.mxu0
    %v786 = vadd.f32 %v626, %v785
    %v787 = vpop.f32.mrf.mxu0
    %v788 = vadd.f32 %v626, %v787
    %v789 = vpop.f32.mrf.mxu0
    %v790 = vadd.f32 %v631, %v789
    %v791 = vpop.f32.mrf.mxu0
    %v792 = vadd.f32 %v631, %v791
    %793 = vmatprep.mubr.bf16.mxu0 0
    %794 = vmatmul.mubr.bf16.gmra.mxu0 %v691
    %v795 = vpop.f32.mrf.mxu0
    %v796 = vadd.f32 %v636, %v795
    %v797 = vpop.f32.mrf.mxu0
    %v798 = vadd.f32 %v636, %v797
    %v799 = vpop.f32.mrf.mxu0
    %v800 = vadd.f32 %v641, %v799
    %v801 = vpop.f32.mrf.mxu0
    %v802 = vadd.f32 %v641, %v801
    %803 = vmatprep.mubr.bf16.mxu0 0
    %804 = vmatmul.mubr.bf16.gmra.mxu0 %v692
    %v805 = vpop.f32.mrf.mxu0
    %v806 = vadd.f32 %v646, %v805
    %v807 = vpop.f32.mrf.mxu0
    %v808 = vadd.f32 %v646, %v807
    %v809 = vpop.f32.mrf.mxu0
    %v810 = vadd.f32 %v651, %v809
    %v811 = vpop.f32.mrf.mxu0
    %v812 = vadd.f32 %v651, %v811
    %813 = vdwg.mxu0
    %v814 = vmul.f32 %v76, %v736
    %v815 = vmul.f32 %v77, %v738
    %v816 = vmul.f32 %v78, %v740
    %v817 = vmul.f32 %v79, %v742
    %v818 = vmul.f32 %v80, %v746
    %v819 = vmul.f32 %v81, %v748
    %v820 = vmul.f32 %v82, %v750
    %v821 = vmul.f32 %v83, %v752
    %v822 = vmul.f32 %v84, %v756
    %v823 = vmul.f32 %v85, %v758
    %v824 = vmul.f32 %v86, %v760
    %v825 = vmul.f32 %v87, %v762
    %v826 = vmul.f32 %v88, %v766
    %v827 = vmul.f32 %v89, %v768
    %v828 = vmul.f32 %v90, %v770
    %v829 = vmul.f32 %v91, %v772
    %v830 = vmul.f32 %v92, %v776
    %v831 = vmul.f32 %v93, %v778
    %v832 = vmul.f32 %v94, %v780
    %v833 = vmul.f32 %v95, %v782
    %v834 = vmul.f32 %v96, %v786
    %v835 = vmul.f32 %v97, %v788
    %v836 = vmul.f32 %v98, %v790
    %v837 = vmul.f32 %v99, %v792
    %v838 = vmul.f32 %v100, %v796
    %v839 = vmul.f32 %v101, %v798
    %v840 = vmul.f32 %v102, %v800
    %v841 = vmul.f32 %v103, %v802
    %v842 = vmul.f32 %v104, %v806
    %v843 = vmul.f32 %v105, %v808
    %v844 = vmul.f32 %v106, %v810
    %v845 = vmul.f32 %v107, %v812
    %v846 = vadd.f32 %v814, %v493
    %v847 = vadd.f32 %v815, %v494
    %v848 = vadd.f32 %v816, %v495
    %v849 = vadd.f32 %v817, %v496
    %v850 = vadd.f32 %v818, %v497
    %v851 = vadd.f32 %v819, %v498
    %v852 = vadd.f32 %v820, %v499
    %v853 = vadd.f32 %v821, %v500
    %v854 = vadd.f32 %v822, %v501
    %v855 = vadd.f32 %v823, %v502
    %v856 = vadd.f32 %v824, %v503
    %v857 = vadd.f32 %v825, %v504
    %v858 = vadd.f32 %v826, %v505
    %v859 = vadd.f32 %v827, %v506
    %v860 = vadd.f32 %v828, %v507
    %v861 = vadd.f32 %v829, %v508
    %v862 = vadd.f32 %v830, %v509
    %v863 = vadd.f32 %v831, %v510
    %v864 = vadd.f32 %v832, %v511
    %v865 = vadd.f32 %v833, %v512
    %v866 = vadd.f32 %v834, %v513
    %v867 = vadd.f32 %v835, %v514
    %v868 = vadd.f32 %v836, %v515
    %v869 = vadd.f32 %v837, %v516
    %v870 = vadd.f32 %v838, %v517
    %v871 = vadd.f32 %v839, %v518
    %v872 = vadd.f32 %v840, %v519
    %v873 = vadd.f32 %v841, %v520
    %v874 = vadd.f32 %v842, %v521
    %v875 = vadd.f32 %v843, %v522
    %v876 = vadd.f32 %v844, %v523
    %v877 = vadd.f32 %v845, %v524
    %v878 = vld [vmem:[%s6] sm:$0xf]
    %v879 = vld [vmem:[%s6 + $0x4] sm:$0xf]
    %v880 = vld [vmem:[%s6 + $0x8] sm:$0xf]
    %v881 = vld [vmem:[%s6 + $0xc] sm:$0xf]
    %v882 = vld [vmem:[%s6 + $0x10] sm:$0xf]
    %v883 = vld [vmem:[%s6 + $0x14] sm:$0xf]
    %v884 = vld [vmem:[%s6 + $0x18] sm:$0xf]
    %v885 = vld [vmem:[%s6 + $0x1c] sm:$0xf]
    %v886 = vld [vmem:[%s6 + $0x20] sm:$0xf]
    %v887 = vld [vmem:[%s6 + $0x24] sm:$0xf]
    %v888 = vld [vmem:[%s6 + $0x28] sm:$0xf]
    %v889 = vld [vmem:[%s6 + $0x2c] sm:$0xf]
    %v890 = vld [vmem:[%s6 + $0x30] sm:$0xf]
    %v891 = vld [vmem:[%s6 + $0x34] sm:$0xf]
    %v892 = vld [vmem:[%s6 + $0x38] sm:$0xf]
    %v893 = vld [vmem:[%s6 + $0x3c] sm:$0xf]
    %v894 = vpack.c.bf16 %v848, %v846
    %v895 = vpack.c.bf16 %v849, %v847
    %v896 = vpack.c.bf16 %v852, %v850
    %v897 = vpack.c.bf16 %v853, %v851
    %v898 = vpack.c.bf16 %v856, %v854
    %v899 = vpack.c.bf16 %v857, %v855
    %v900 = vpack.c.bf16 %v860, %v858
    %v901 = vpack.c.bf16 %v861, %v859
    %v902 = vpack.c.bf16 %v864, %v862
    %v903 = vpack.c.bf16 %v865, %v863
    %v904 = vpack.c.bf16 %v868, %v866
    %v905 = vpack.c.bf16 %v869, %v867
    %v906 = vpack.c.bf16 %v872, %v870
    %v907 = vpack.c.bf16 %v873, %v871
    %v908 = vpack.c.bf16 %v876, %v874
    %v909 = vpack.c.bf16 %v877, %v875
    %v910 = vld [vmem:[%s7] sm:$0xff]
    %v911 = vld [vmem:[%s7 + $0x8] sm:$0xff]
    %v912 = vld [vmem:[%s7 + $0x10] sm:$0xff]
    %v913 = vld [vmem:[%s7 + $0x18] sm:$0xff]
    %v914 = vld [vmem:[%s7 + $0x20] sm:$0xff]
    %v915 = vld [vmem:[%s7 + $0x28] sm:$0xff]
    %v916 = vld [vmem:[%s7 + $0x30] sm:$0xff]
    %v917 = vld [vmem:[%s7 + $0x38] sm:$0xff]
    %v918 = vld [vmem:[%s7 + $0x40] sm:$0xff]
    %v919 = vld [vmem:[%s7 + $0x48] sm:$0xff]
    %v920 = vld [vmem:[%s7 + $0x50] sm:$0xff]
    %v921 = vld [vmem:[%s7 + $0x58] sm:$0xff]
    %v922 = vld [vmem:[%s7 + $0x60] sm:$0xff]
    %v923 = vld [vmem:[%s7 + $0x68] sm:$0xff]
    %v924 = vld [vmem:[%s7 + $0x70] sm:$0xff]
    %v925 = vld [vmem:[%s7 + $0x78] sm:$0xff]
    %927 = vset.pattern.permute.xlu0 0
    %928 = vperm.xlu0 %927, %v910
    %v929 = vpop.permute.xlu0 %928
    %932 = vset.pattern.permute.xlu0 0
    %933 = vperm.xlu0 %932, %v911
    %v934 = vpop.permute.xlu0 %933
    %937 = vset.pattern.permute.xlu0 0
    %938 = vperm.xlu0 %937, %v912
    %v939 = vpop.permute.xlu0 %938
    %942 = vset.pattern.permute.xlu0 0
    %943 = vperm.xlu0 %942, %v913
    %v944 = vpop.permute.xlu0 %943
    %947 = vset.pattern.permute.xlu0 0
    %948 = vperm.xlu0 %947, %v914
    %v949 = vpop.permute.xlu0 %948
    %952 = vset.pattern.permute.xlu0 0
    %953 = vperm.xlu0 %952, %v915
    %v954 = vpop.permute.xlu0 %953
    %957 = vset.pattern.permute.xlu0 0
    %958 = vperm.xlu0 %957, %v916
    %v959 = vpop.permute.xlu0 %958
    %962 = vset.pattern.permute.xlu0 0
    %963 = vperm.xlu0 %962, %v917
    %v964 = vpop.permute.xlu0 %963
    %967 = vset.pattern.permute.xlu0 0
    %968 = vperm.xlu0 %967, %v918
    %v969 = vpop.permute.xlu0 %968
    %972 = vset.pattern.permute.xlu0 0
    %973 = vperm.xlu0 %972, %v919
    %v974 = vpop.permute.xlu0 %973
    %977 = vset.pattern.permute.xlu0 0
    %978 = vperm.xlu0 %977, %v920
    %v979 = vpop.permute.xlu0 %978
    %982 = vset.pattern.permute.xlu0 0
    %983 = vperm.xlu0 %982, %v921
    %v984 = vpop.permute.xlu0 %983
    %987 = vset.pattern.permute.xlu0 0
    %988 = vperm.xlu0 %987, %v922
    %v989 = vpop.permute.xlu0 %988
    %992 = vset.pattern.permute.xlu0 0
    %993 = vperm.xlu0 %992, %v923
    %v994 = vpop.permute.xlu0 %993
    %997 = vset.pattern.permute.xlu0 0
    %998 = vperm.xlu0 %997, %v924
    %v999 = vpop.permute.xlu0 %998
    %1002 = vset.pattern.permute.xlu0 0
    %1003 = vperm.xlu0 %1002, %v925
    %v1004 = vpop.permute.xlu0 %1003
    %v1022 = vunpack.c.l.b16 %v878
    %v1023 = vunpack.c.l.b16 %v879
    %v1024 = vunpack.c.l.b16 %v880
    %v1025 = vunpack.c.l.b16 %v881
    %v1026 = vunpack.c.l.b16 %v882
    %v1027 = vunpack.c.l.b16 %v883
    %v1028 = vunpack.c.l.b16 %v884
    %v1029 = vunpack.c.l.b16 %v885
    %v1030 = vunpack.c.l.b16 %v886
    %v1031 = vunpack.c.l.b16 %v887
    %v1032 = vunpack.c.l.b16 %v888
    %v1033 = vunpack.c.l.b16 %v889
    %v1034 = vunpack.c.l.b16 %v890
    %v1035 = vunpack.c.l.b16 %v891
    %v1036 = vunpack.c.l.b16 %v892
    %v1037 = vunpack.c.l.b16 %v893
    %v1038 = vpack.c.b16 %v1023, %v1022
    %v1039 = vpack.c.b16 %v1025, %v1024
    %v1040 = vpack.c.b16 %v1027, %v1026
    %v1041 = vpack.c.b16 %v1029, %v1028
    %v1042 = vpack.c.b16 %v1031, %v1030
    %v1043 = vpack.c.b16 %v1033, %v1032
    %v1044 = vpack.c.b16 %v1035, %v1034
    %v1045 = vpack.c.b16 %v1037, %v1036
    %1054 = vmatprep.subr.bf16.mxu0 %v909
    %1055 = vmatpush1.bf16.msra.mxu0 %v908
    %1056 = vmatprep.subr.bf16.mxu0 %v907
    %1057 = vmatpush1.bf16.msra.mxu0 %v906
    %1058 = vmatprep.subr.bf16.mxu0 %v905
    %1059 = vmatpush1.bf16.msra.mxu0 %v904
    %1060 = vmatprep.subr.bf16.mxu0 %v903
    %1061 = vmatpush1.bf16.msra.mxu0 %v902
    %1062 = vmatprep.subr.bf16.mxu0 %v901
    %1063 = vmatpush1.bf16.msra.mxu0 %v900
    %1064 = vmatprep.subr.bf16.mxu0 %v899
    %1065 = vmatpush1.bf16.msra.mxu0 %v898
    %1066 = vmatprep.subr.bf16.mxu0 %v897
    %1067 = vmatpush1.bf16.msra.mxu0 %v896
    %1068 = vmatprep.subr.bf16.mxu0 %v895
    %1069 = vmatpush1.bf16.msra.mxu0 %v894
    %1070 = vmatprep.subr.bf16.mxu0 0
    %1071 = vmatpush2.bf16.msra.mxu0 0
    %1072 = vmatprep.subr.bf16.mxu0 0
    %1073 = vmatpush2.bf16.msra.mxu0 0
    %1074 = vmatprep.subr.bf16.mxu0 0
    %1075 = vmatpush2.bf16.msra.mxu0 0
    %1076 = vmatprep.subr.bf16.mxu0 0
    %1077 = vmatpush2.bf16.msra.mxu0 0
    %1078 = vmatprep.subr.bf16.mxu0 0
    %1079 = vmatpush2.bf16.msra.mxu0 0
    %1080 = vmatprep.subr.bf16.mxu0 0
    %1081 = vmatpush2.bf16.msra.mxu0 0
    %1082 = vmatprep.subr.bf16.mxu0 0
    %1083 = vmatpush2.bf16.msra.mxu0 0
    %1084 = vmatprep.subr.bf16.mxu0 0
    %1085 = vmatpush2.bf16.msra.mxu0 0
    %1086 = vmatprep.mubr.bf16.mxu0 0
    %1087 = vmatmul.mubr.bf16.gmra.mxu0 %v1038
    %v1088 = vpop.f32.mrf.mxu0
    %v1089 = vadd.f32 %v929, %v1088
    %v1090 = vpop.f32.mrf.mxu0
    %v1091 = vadd.f32 %v929, %v1090
    %v1092 = vpop.f32.mrf.mxu0
    %v1093 = vadd.f32 %v934, %v1092
    %v1094 = vpop.f32.mrf.mxu0
    %v1095 = vadd.f32 %v934, %v1094
    %1096 = vmatprep.mubr.bf16.mxu0 0
    %1097 = vmatmul.mubr.bf16.gmra.mxu0 %v1039
    %v1098 = vpop.f32.mrf.mxu0
    %v1099 = vadd.f32 %v939, %v1098
    %v1100 = vpop.f32.mrf.mxu0
    %v1101 = vadd.f32 %v939, %v1100
    %v1102 = vpop.f32.mrf.mxu0
    %v1103 = vadd.f32 %v944, %v1102
    %v1104 = vpop.f32.mrf.mxu0
    %v1105 = vadd.f32 %v944, %v1104
    %1106 = vmatprep.mubr.bf16.mxu0 0
    %1107 = vmatmul.mubr.bf16.gmra.mxu0 %v1040
    %v1108 = vpop.f32.mrf.mxu0
    %v1109 = vadd.f32 %v949, %v1108
    %v1110 = vpop.f32.mrf.mxu0
    %v1111 = vadd.f32 %v949, %v1110
    %v1112 = vpop.f32.mrf.mxu0
    %v1113 = vadd.f32 %v954, %v1112
    %v1114 = vpop.f32.mrf.mxu0
    %v1115 = vadd.f32 %v954, %v1114
    %1116 = vmatprep.mubr.bf16.mxu0 0
    %1117 = vmatmul.mubr.bf16.gmra.mxu0 %v1041
    %v1118 = vpop.f32.mrf.mxu0
    %v1119 = vadd.f32 %v959, %v1118
    %v1120 = vpop.f32.mrf.mxu0
    %v1121 = vadd.f32 %v959, %v1120
    %v1122 = vpop.f32.mrf.mxu0
    %v1123 = vadd.f32 %v964, %v1122
    %v1124 = vpop.f32.mrf.mxu0
    %v1125 = vadd.f32 %v964, %v1124
    %1126 = vmatprep.mubr.bf16.mxu0 0
    %1127 = vmatmul.mubr.bf16.gmra.mxu0 %v1042
    %v1128 = vpop.f32.mrf.mxu0
    %v1129 = vadd.f32 %v969, %v1128
    %v1130 = vpop.f32.mrf.mxu0
    %v1131 = vadd.f32 %v969, %v1130
    %v1132 = vpop.f32.mrf.mxu0
    %v1133 = vadd.f32 %v974, %v1132
    %v1134 = vpop.f32.mrf.mxu0
    %v1135 = vadd.f32 %v974, %v1134
    %1136 = vmatprep.mubr.bf16.mxu0 0
    %1137 = vmatmul.mubr.bf16.gmra.mxu0 %v1043
    %v1138 = vpop.f32.mrf.mxu0
    %v1139 = vadd.f32 %v979, %v1138
    %v1140 = vpop.f32.mrf.mxu0
    %v1141 = vadd.f32 %v979, %v1140
    %v1142 = vpop.f32.mrf.mxu0
    %v1143 = vadd.f32 %v984, %v1142
    %v1144 = vpop.f32.mrf.mxu0
    %v1145 = vadd.f32 %v984, %v1144
    %1146 = vmatprep.mubr.bf16.mxu0 0
    %1147 = vmatmul.mubr.bf16.gmra.mxu0 %v1044
    %v1148 = vpop.f32.mrf.mxu0
    %v1149 = vadd.f32 %v989, %v1148
    %v1150 = vpop.f32.mrf.mxu0
    %v1151 = vadd.f32 %v989, %v1150
    %v1152 = vpop.f32.mrf.mxu0
    %v1153 = vadd.f32 %v994, %v1152
    %v1154 = vpop.f32.mrf.mxu0
    %v1155 = vadd.f32 %v994, %v1154
    %1156 = vmatprep.mubr.bf16.mxu0 0
    %1157 = vmatmul.mubr.bf16.gmra.mxu0 %v1045
    %v1158 = vpop.f32.mrf.mxu0
    %v1159 = vadd.f32 %v999, %v1158
    %v1160 = vpop.f32.mrf.mxu0
    %v1161 = vadd.f32 %v999, %v1160
    %v1162 = vpop.f32.mrf.mxu0
    %v1163 = vadd.f32 %v1004, %v1162
    %v1164 = vpop.f32.mrf.mxu0
    %v1165 = vadd.f32 %v1004, %v1164
    %1166 = vdwg.mxu0
    %v1167 = vmul.f32 %v76, %v1089
    %v1168 = vmul.f32 %v77, %v1091
    %v1169 = vmul.f32 %v78, %v1093
    %v1170 = vmul.f32 %v79, %v1095
    %v1171 = vmul.f32 %v80, %v1099
    %v1172 = vmul.f32 %v81, %v1101
    %v1173 = vmul.f32 %v82, %v1103
    %v1174 = vmul.f32 %v83, %v1105
    %v1175 = vmul.f32 %v84, %v1109
    %v1176 = vmul.f32 %v85, %v1111
    %v1177 = vmul.f32 %v86, %v1113
    %v1178 = vmul.f32 %v87, %v1115
    %v1179 = vmul.f32 %v88, %v1119
    %v1180 = vmul.f32 %v89, %v1121
    %v1181 = vmul.f32 %v90, %v1123
    %v1182 = vmul.f32 %v91, %v1125
    %v1183 = vmul.f32 %v92, %v1129
    %v1184 = vmul.f32 %v93, %v1131
    %v1185 = vmul.f32 %v94, %v1133
    %v1186 = vmul.f32 %v95, %v1135
    %v1187 = vmul.f32 %v96, %v1139
    %v1188 = vmul.f32 %v97, %v1141
    %v1189 = vmul.f32 %v98, %v1143
    %v1190 = vmul.f32 %v99, %v1145
    %v1191 = vmul.f32 %v100, %v1149
    %v1192 = vmul.f32 %v101, %v1151
    %v1193 = vmul.f32 %v102, %v1153
    %v1194 = vmul.f32 %v103, %v1155
    %v1195 = vmul.f32 %v104, %v1159
    %v1196 = vmul.f32 %v105, %v1161
    %v1197 = vmul.f32 %v106, %v1163
    %v1198 = vmul.f32 %v107, %v1165
    %v1199 = vadd.f32 %v1167, %v846
    %v1200 = vadd.f32 %v1168, %v847
    %v1201 = vadd.f32 %v1169, %v848
    %v1202 = vadd.f32 %v1170, %v849
    %v1203 = vadd.f32 %v1171, %v850
    %v1204 = vadd.f32 %v1172, %v851
    %v1205 = vadd.f32 %v1173, %v852
    %v1206 = vadd.f32 %v1174, %v853
    %v1207 = vadd.f32 %v1175, %v854
    %v1208 = vadd.f32 %v1176, %v855
    %v1209 = vadd.f32 %v1177, %v856
    %v1210 = vadd.f32 %v1178, %v857
    %v1211 = vadd.f32 %v1179, %v858
    %v1212 = vadd.f32 %v1180, %v859
    %v1213 = vadd.f32 %v1181, %v860
    %v1214 = vadd.f32 %v1182, %v861
    %v1215 = vadd.f32 %v1183, %v862
    %v1216 = vadd.f32 %v1184, %v863
    %v1217 = vadd.f32 %v1185, %v864
    %v1218 = vadd.f32 %v1186, %v865
    %v1219 = vadd.f32 %v1187, %v866
    %v1220 = vadd.f32 %v1188, %v867
    %v1221 = vadd.f32 %v1189, %v868
    %v1222 = vadd.f32 %v1190, %v869
    %v1223 = vadd.f32 %v1191, %v870
    %v1224 = vadd.f32 %v1192, %v871
    %v1225 = vadd.f32 %v1193, %v872
    %v1226 = vadd.f32 %v1194, %v873
    %v1227 = vadd.f32 %v1195, %v874
    %v1228 = vadd.f32 %v1196, %v875
    %v1229 = vadd.f32 %v1197, %v876
    %v1230 = vadd.f32 %v1198, %v877
    %v1231 = vld [vmem:[%s8] sm:$0xf]
    %v1232 = vld [vmem:[%s8 + $0x4] sm:$0xf]
    %v1233 = vld [vmem:[%s8 + $0x8] sm:$0xf]
    %v1234 = vld [vmem:[%s8 + $0xc] sm:$0xf]
    %v1235 = vld [vmem:[%s8 + $0x10] sm:$0xf]
    %v1236 = vld [vmem:[%s8 + $0x14] sm:$0xf]
    %v1237 = vld [vmem:[%s8 + $0x18] sm:$0xf]
    %v1238 = vld [vmem:[%s8 + $0x1c] sm:$0xf]
    %v1239 = vld [vmem:[%s8 + $0x20] sm:$0xf]
    %v1240 = vld [vmem:[%s8 + $0x24] sm:$0xf]
    %v1241 = vld [vmem:[%s8 + $0x28] sm:$0xf]
    %v1242 = vld [vmem:[%s8 + $0x2c] sm:$0xf]
    %v1243 = vld [vmem:[%s8 + $0x30] sm:$0xf]
    %v1244 = vld [vmem:[%s8 + $0x34] sm:$0xf]
    %v1245 = vld [vmem:[%s8 + $0x38] sm:$0xf]
    %v1246 = vld [vmem:[%s8 + $0x3c] sm:$0xf]
    %v1247 = vpack.c.bf16 %v1201, %v1199
    %v1248 = vpack.c.bf16 %v1202, %v1200
    %v1249 = vpack.c.bf16 %v1205, %v1203
    %v1250 = vpack.c.bf16 %v1206, %v1204
    %v1251 = vpack.c.bf16 %v1209, %v1207
    %v1252 = vpack.c.bf16 %v1210, %v1208
    %v1253 = vpack.c.bf16 %v1213, %v1211
    %v1254 = vpack.c.bf16 %v1214, %v1212
    %v1255 = vpack.c.bf16 %v1217, %v1215
    %v1256 = vpack.c.bf16 %v1218, %v1216
    %v1257 = vpack.c.bf16 %v1221, %v1219
    %v1258 = vpack.c.bf16 %v1222, %v1220
    %v1259 = vpack.c.bf16 %v1225, %v1223
    %v1260 = vpack.c.bf16 %v1226, %v1224
    %v1261 = vpack.c.bf16 %v1229, %v1227
    %v1262 = vpack.c.bf16 %v1230, %v1228
    %v1263 = vld [vmem:[%s9] sm:$0xff]
    %v1264 = vld [vmem:[%s9 + $0x8] sm:$0xff]
    %v1265 = vld [vmem:[%s9 + $0x10] sm:$0xff]
    %v1266 = vld [vmem:[%s9 + $0x18] sm:$0xff]
    %v1267 = vld [vmem:[%s9 + $0x20] sm:$0xff]
    %v1268 = vld [vmem:[%s9 + $0x28] sm:$0xff]
    %v1269 = vld [vmem:[%s9 + $0x30] sm:$0xff]
    %v1270 = vld [vmem:[%s9 + $0x38] sm:$0xff]
    %v1271 = vld [vmem:[%s9 + $0x40] sm:$0xff]
    %v1272 = vld [vmem:[%s9 + $0x48] sm:$0xff]
    %v1273 = vld [vmem:[%s9 + $0x50] sm:$0xff]
    %v1274 = vld [vmem:[%s9 + $0x58] sm:$0xff]
    %v1275 = vld [vmem:[%s9 + $0x60] sm:$0xff]
    %v1276 = vld [vmem:[%s9 + $0x68] sm:$0xff]
    %v1277 = vld [vmem:[%s9 + $0x70] sm:$0xff]
    %v1278 = vld [vmem:[%s9 + $0x78] sm:$0xff]
    %1280 = vset.pattern.permute.xlu0 0
    %1281 = vperm.xlu0 %1280, %v1263
    %v1282 = vpop.permute.xlu0 %1281
    %1285 = vset.pattern.permute.xlu0 0
    %1286 = vperm.xlu0 %1285, %v1264
    %v1287 = vpop.permute.xlu0 %1286
    %1290 = vset.pattern.permute.xlu0 0
    %1291 = vperm.xlu0 %1290, %v1265
    %v1292 = vpop.permute.xlu0 %1291
    %1295 = vset.pattern.permute.xlu0 0
    %1296 = vperm.xlu0 %1295, %v1266
    %v1297 = vpop.permute.xlu0 %1296
    %1300 = vset.pattern.permute.xlu0 0
    %1301 = vperm.xlu0 %1300, %v1267
    %v1302 = vpop.permute.xlu0 %1301
    %1305 = vset.pattern.permute.xlu0 0
    %1306 = vperm.xlu0 %1305, %v1268
    %v1307 = vpop.permute.xlu0 %1306
    %1310 = vset.pattern.permute.xlu0 0
    %1311 = vperm.xlu0 %1310, %v1269
    %v1312 = vpop.permute.xlu0 %1311
    %1315 = vset.pattern.permute.xlu0 0
    %1316 = vperm.xlu0 %1315, %v1270
    %v1317 = vpop.permute.xlu0 %1316
    %1320 = vset.pattern.permute.xlu0 0
    %1321 = vperm.xlu0 %1320, %v1271
    %v1322 = vpop.permute.xlu0 %1321
    %1325 = vset.pattern.permute.xlu0 0
    %1326 = vperm.xlu0 %1325, %v1272
    %v1327 = vpop.permute.xlu0 %1326
    %1330 = vset.pattern.permute.xlu0 0
    %1331 = vperm.xlu0 %1330, %v1273
    %v1332 = vpop.permute.xlu0 %1331
    %1335 = vset.pattern.permute.xlu0 0
    %1336 = vperm.xlu0 %1335, %v1274
    %v1337 = vpop.permute.xlu0 %1336
    %1340 = vset.pattern.permute.xlu0 0
    %1341 = vperm.xlu0 %1340, %v1275
    %v1342 = vpop.permute.xlu0 %1341
    %1345 = vset.pattern.permute.xlu0 0
    %1346 = vperm.xlu0 %1345, %v1276
    %v1347 = vpop.permute.xlu0 %1346
    %1350 = vset.pattern.permute.xlu0 0
    %1351 = vperm.xlu0 %1350, %v1277
    %v1352 = vpop.permute.xlu0 %1351
    %1355 = vset.pattern.permute.xlu0 0
    %1356 = vperm.xlu0 %1355, %v1278
    %v1357 = vpop.permute.xlu0 %1356
    %v1375 = vunpack.c.l.b16 %v1231
    %v1376 = vunpack.c.l.b16 %v1232
    %v1377 = vunpack.c.l.b16 %v1233
    %v1378 = vunpack.c.l.b16 %v1234
    %v1379 = vunpack.c.l.b16 %v1235
    %v1380 = vunpack.c.l.b16 %v1236
    %v1381 = vunpack.c.l.b16 %v1237
    %v1382 = vunpack.c.l.b16 %v1238
    %v1383 = vunpack.c.l.b16 %v1239
    %v1384 = vunpack.c.l.b16 %v1240
    %v1385 = vunpack.c.l.b16 %v1241
    %v1386 = vunpack.c.l.b16 %v1242
    %v1387 = vunpack.c.l.b16 %v1243
    %v1388 = vunpack.c.l.b16 %v1244
    %v1389 = vunpack.c.l.b16 %v1245
    %v1390 = vunpack.c.l.b16 %v1246
    %v1391 = vpack.c.b16 %v1376, %v1375
    %v1392 = vpack.c.b16 %v1378, %v1377
    %v1393 = vpack.c.b16 %v1380, %v1379
    %v1394 = vpack.c.b16 %v1382, %v1381
    %v1395 = vpack.c.b16 %v1384, %v1383
    %v1396 = vpack.c.b16 %v1386, %v1385
    %v1397 = vpack.c.b16 %v1388, %v1387
    %v1398 = vpack.c.b16 %v1390, %v1389
    %1407 = vmatprep.subr.bf16.mxu0 %v1262
    %1408 = vmatpush1.bf16.msra.mxu0 %v1261
    %1409 = vmatprep.subr.bf16.mxu0 %v1260
    %1410 = vmatpush1.bf16.msra.mxu0 %v1259
    %1411 = vmatprep.subr.bf16.mxu0 %v1258
    %1412 = vmatpush1.bf16.msra.mxu0 %v1257
    %1413 = vmatprep.subr.bf16.mxu0 %v1256
    %1414 = vmatpush1.bf16.msra.mxu0 %v1255
    %1415 = vmatprep.subr.bf16.mxu0 %v1254
    %1416 = vmatpush1.bf16.msra.mxu0 %v1253
    %1417 = vmatprep.subr.bf16.mxu0 %v1252
    %1418 = vmatpush1.bf16.msra.mxu0 %v1251
    %1419 = vmatprep.subr.bf16.mxu0 %v1250
    %1420 = vmatpush1.bf16.msra.mxu0 %v1249
    %1421 = vmatprep.subr.bf16.mxu0 %v1248
    %1422 = vmatpush1.bf16.msra.mxu0 %v1247
    %1423 = vmatprep.subr.bf16.mxu0 0
    %1424 = vmatpush2.bf16.msra.mxu0 0
    %1425 = vmatprep.subr.bf16.mxu0 0
    %1426 = vmatpush2.bf16.msra.mxu0 0
    %1427 = vmatprep.subr.bf16.mxu0 0
    %1428 = vmatpush2.bf16.msra.mxu0 0
    %1429 = vmatprep.subr.bf16.mxu0 0
    %1430 = vmatpush2.bf16.msra.mxu0 0
    %1431 = vmatprep.subr.bf16.mxu0 0
    %1432 = vmatpush2.bf16.msra.mxu0 0
    %1433 = vmatprep.subr.bf16.mxu0 0
    %1434 = vmatpush2.bf16.msra.mxu0 0
    %1435 = vmatprep.subr.bf16.mxu0 0
    %1436 = vmatpush2.bf16.msra.mxu0 0
    %1437 = vmatprep.subr.bf16.mxu0 0
    %1438 = vmatpush2.bf16.msra.mxu0 0
    %1439 = vmatprep.mubr.bf16.mxu0 0
    %1440 = vmatmul.mubr.bf16.gmra.mxu0 %v1391
    %v1441 = vpop.f32.mrf.mxu0
    %v1442 = vadd.f32 %v1282, %v1441
    %v1443 = vpop.f32.mrf.mxu0
    %v1444 = vadd.f32 %v1282, %v1443
    %v1445 = vpop.f32.mrf.mxu0
    %v1446 = vadd.f32 %v1287, %v1445
    %v1447 = vpop.f32.mrf.mxu0
    %v1448 = vadd.f32 %v1287, %v1447
    %1449 = vmatprep.mubr.bf16.mxu0 0
    %1450 = vmatmul.mubr.bf16.gmra.mxu0 %v1392
    %v1451 = vpop.f32.mrf.mxu0
    %v1452 = vadd.f32 %v1292, %v1451
    %v1453 = vpop.f32.mrf.mxu0
    %v1454 = vadd.f32 %v1292, %v1453
    %v1455 = vpop.f32.mrf.mxu0
    %v1456 = vadd.f32 %v1297, %v1455
    %v1457 = vpop.f32.mrf.mxu0
    %v1458 = vadd.f32 %v1297, %v1457
    %1459 = vmatprep.mubr.bf16.mxu0 0
    %1460 = vmatmul.mubr.bf16.gmra.mxu0 %v1393
    %v1461 = vpop.f32.mrf.mxu0
    %v1462 = vadd.f32 %v1302, %v1461
    %v1463 = vpop.f32.mrf.mxu0
    %v1464 = vadd.f32 %v1302, %v1463
    %v1465 = vpop.f32.mrf.mxu0
    %v1466 = vadd.f32 %v1307, %v1465
    %v1467 = vpop.f32.mrf.mxu0
    %v1468 = vadd.f32 %v1307, %v1467
    %1469 = vmatprep.mubr.bf16.mxu0 0
    %1470 = vmatmul.mubr.bf16.gmra.mxu0 %v1394
    %v1471 = vpop.f32.mrf.mxu0
    %v1472 = vadd.f32 %v1312, %v1471
    %v1473 = vpop.f32.mrf.mxu0
    %v1474 = vadd.f32 %v1312, %v1473
    %v1475 = vpop.f32.mrf.mxu0
    %v1476 = vadd.f32 %v1317, %v1475
    %v1477 = vpop.f32.mrf.mxu0
    %v1478 = vadd.f32 %v1317, %v1477
    %1479 = vmatprep.mubr.bf16.mxu0 0
    %1480 = vmatmul.mubr.bf16.gmra.mxu0 %v1395
    %v1481 = vpop.f32.mrf.mxu0
    %v1482 = vadd.f32 %v1322, %v1481
    %v1483 = vpop.f32.mrf.mxu0
    %v1484 = vadd.f32 %v1322, %v1483
    %v1485 = vpop.f32.mrf.mxu0
    %v1486 = vadd.f32 %v1327, %v1485
    %v1487 = vpop.f32.mrf.mxu0
    %v1488 = vadd.f32 %v1327, %v1487
    %1489 = vmatprep.mubr.bf16.mxu0 0
    %1490 = vmatmul.mubr.bf16.gmra.mxu0 %v1396
    %v1491 = vpop.f32.mrf.mxu0
    %v1492 = vadd.f32 %v1332, %v1491
    %v1493 = vpop.f32.mrf.mxu0
    %v1494 = vadd.f32 %v1332, %v1493
    %v1495 = vpop.f32.mrf.mxu0
    %v1496 = vadd.f32 %v1337, %v1495
    %v1497 = vpop.f32.mrf.mxu0
    %v1498 = vadd.f32 %v1337, %v1497
    %1499 = vmatprep.mubr.bf16.mxu0 0
    %1500 = vmatmul.mubr.bf16.gmra.mxu0 %v1397
    %v1501 = vpop.f32.mrf.mxu0
    %v1502 = vadd.f32 %v1342, %v1501
    %v1503 = vpop.f32.mrf.mxu0
    %v1504 = vadd.f32 %v1342, %v1503
    %v1505 = vpop.f32.mrf.mxu0
    %v1506 = vadd.f32 %v1347, %v1505
    %v1507 = vpop.f32.mrf.mxu0
    %v1508 = vadd.f32 %v1347, %v1507
    %1509 = vmatprep.mubr.bf16.mxu0 0
    %1510 = vmatmul.mubr.bf16.gmra.mxu0 %v1398
    %v1511 = vpop.f32.mrf.mxu0
    %v1512 = vadd.f32 %v1352, %v1511
    %v1513 = vpop.f32.mrf.mxu0
    %v1514 = vadd.f32 %v1352, %v1513
    %v1515 = vpop.f32.mrf.mxu0
    %v1516 = vadd.f32 %v1357, %v1515
    %v1517 = vpop.f32.mrf.mxu0
    %v1518 = vadd.f32 %v1357, %v1517
    %1519 = vdwg.mxu0
    %v1520 = vmax.f32 %v1442, 0.0
    %v1521 = vmax.f32 %v1444, 0.0
    %v1522 = vmax.f32 %v1446, 0.0
    %v1523 = vmax.f32 %v1448, 0.0
    %v1524 = vmax.f32 %v1452, 0.0
    %v1525 = vmax.f32 %v1454, 0.0
    %v1526 = vmax.f32 %v1456, 0.0
    %v1527 = vmax.f32 %v1458, 0.0
    %v1528 = vmax.f32 %v1462, 0.0
    %v1529 = vmax.f32 %v1464, 0.0
    %v1530 = vmax.f32 %v1466, 0.0
    %v1531 = vmax.f32 %v1468, 0.0
    %v1532 = vmax.f32 %v1472, 0.0
    %v1533 = vmax.f32 %v1474, 0.0
    %v1534 = vmax.f32 %v1476, 0.0
    %v1535 = vmax.f32 %v1478, 0.0
    %v1536 = vmax.f32 %v1482, 0.0
    %v1537 = vmax.f32 %v1484, 0.0
    %v1538 = vmax.f32 %v1486, 0.0
    %v1539 = vmax.f32 %v1488, 0.0
    %v1540 = vmax.f32 %v1492, 0.0
    %v1541 = vmax.f32 %v1494, 0.0
    %v1542 = vmax.f32 %v1496, 0.0
    %v1543 = vmax.f32 %v1498, 0.0
    %v1544 = vmax.f32 %v1502, 0.0
    %v1545 = vmax.f32 %v1504, 0.0
    %v1546 = vmax.f32 %v1506, 0.0
    %v1547 = vmax.f32 %v1508, 0.0
    %v1548 = vmax.f32 %v1512, 0.0
    %v1549 = vmax.f32 %v1514, 0.0
    %v1550 = vmax.f32 %v1516, 0.0
    %v1551 = vmax.f32 %v1518, 0.0
    %v1552 = vld [vmem:[%s10] sm:$0xf]
    %v1553 = vld [vmem:[%s10 + $0x4] sm:$0xf]
    %v1554 = vld [vmem:[%s10 + $0x8] sm:$0xf]
    %v1555 = vld [vmem:[%s10 + $0xc] sm:$0xf]
    %v1556 = vld [vmem:[%s10 + $0x10] sm:$0xf]
    %v1557 = vld [vmem:[%s10 + $0x14] sm:$0xf]
    %v1558 = vld [vmem:[%s10 + $0x18] sm:$0xf]
    %v1559 = vld [vmem:[%s10 + $0x1c] sm:$0xf]
    %v1560 = vpack.c.bf16 %v1522, %v1520
    %v1561 = vpack.c.bf16 %v1523, %v1521
    %v1562 = vpack.c.bf16 %v1526, %v1524
    %v1563 = vpack.c.bf16 %v1527, %v1525
    %v1564 = vpack.c.bf16 %v1530, %v1528
    %v1565 = vpack.c.bf16 %v1531, %v1529
    %v1566 = vpack.c.bf16 %v1534, %v1532
    %v1567 = vpack.c.bf16 %v1535, %v1533
    %v1568 = vpack.c.bf16 %v1538, %v1536
    %v1569 = vpack.c.bf16 %v1539, %v1537
    %v1570 = vpack.c.bf16 %v1542, %v1540
    %v1571 = vpack.c.bf16 %v1543, %v1541
    %v1572 = vpack.c.bf16 %v1546, %v1544
    %v1573 = vpack.c.bf16 %v1547, %v1545
    %v1574 = vpack.c.bf16 %v1550, %v1548
    %v1575 = vpack.c.bf16 %v1551, %v1549
    %v1576 = vld [vmem:[%s11] sm:$0xff]
    %v1577 = vld [vmem:[%s11 + $0x8] sm:$0xff]
    %v1578 = vld [vmem:[%s11 + $0x10] sm:$0xff]
    %v1579 = vld [vmem:[%s11 + $0x18] sm:$0xff]
    %v1580 = vld [vmem:[%s11 + $0x20] sm:$0xff]
    %v1581 = vld [vmem:[%s11 + $0x28] sm:$0xff]
    %v1582 = vld [vmem:[%s11 + $0x30] sm:$0xff]
    %v1583 = vld [vmem:[%s11 + $0x38] sm:$0xff]
    %1585 = vset.pattern.permute.xlu0 0
    %1586 = vperm.xlu0 %1585, %v1576
    %v1587 = vpop.permute.xlu0 %1586
    %1590 = vset.pattern.permute.xlu0 0
    %1591 = vperm.xlu0 %1590, %v1577
    %v1592 = vpop.permute.xlu0 %1591
    %1595 = vset.pattern.permute.xlu0 0
    %1596 = vperm.xlu0 %1595, %v1578
    %v1597 = vpop.permute.xlu0 %1596
    %1600 = vset.pattern.permute.xlu0 0
    %1601 = vperm.xlu0 %1600, %v1579
    %v1602 = vpop.permute.xlu0 %1601
    %1605 = vset.pattern.permute.xlu0 0
    %1606 = vperm.xlu0 %1605, %v1580
    %v1607 = vpop.permute.xlu0 %1606
    %1610 = vset.pattern.permute.xlu0 0
    %1611 = vperm.xlu0 %1610, %v1581
    %v1612 = vpop.permute.xlu0 %1611
    %1615 = vset.pattern.permute.xlu0 0
    %1616 = vperm.xlu0 %1615, %v1582
    %v1617 = vpop.permute.xlu0 %1616
    %1620 = vset.pattern.permute.xlu0 0
    %1621 = vperm.xlu0 %1620, %v1583
    %v1622 = vpop.permute.xlu0 %1621
    %v1632 = vunpack.c.l.b16 %v1552
    %v1633 = vunpack.c.l.b16 %v1553
    %v1634 = vunpack.c.l.b16 %v1554
    %v1635 = vunpack.c.l.b16 %v1555
    %v1636 = vunpack.c.l.b16 %v1556
    %v1637 = vunpack.c.l.b16 %v1557
    %v1638 = vunpack.c.l.b16 %v1558
    %v1639 = vunpack.c.l.b16 %v1559
    %v1640 = vpack.c.b16 %v1633, %v1632
    %v1641 = vpack.c.b16 %v1635, %v1634
    %v1642 = vpack.c.b16 %v1637, %v1636
    %v1643 = vpack.c.b16 %v1639, %v1638
    %1648 = vmatprep.subr.bf16.mxu0 %v1575
    %1649 = vmatpush1.bf16.msra.mxu0 %v1574
    %1650 = vmatprep.subr.bf16.mxu0 %v1573
    %1651 = vmatpush1.bf16.msra.mxu0 %v1572
    %1652 = vmatprep.subr.bf16.mxu0 %v1571
    %1653 = vmatpush1.bf16.msra.mxu0 %v1570
    %1654 = vmatprep.subr.bf16.mxu0 %v1569
    %1655 = vmatpush1.bf16.msra.mxu0 %v1568
    %1656 = vmatprep.subr.bf16.mxu0 %v1567
    %1657 = vmatpush1.bf16.msra.mxu0 %v1566
    %1658 = vmatprep.subr.bf16.mxu0 %v1565
    %1659 = vmatpush1.bf16.msra.mxu0 %v1564
    %1660 = vmatprep.subr.bf16.mxu0 %v1563
    %1661 = vmatpush1.bf16.msra.mxu0 %v1562
    %1662 = vmatprep.subr.bf16.mxu0 %v1561
    %1663 = vmatpush1.bf16.msra.mxu0 %v1560
    %1664 = vmatprep.subr.bf16.mxu0 0
    %1665 = vmatpush2.bf16.msra.mxu0 0
    %1666 = vmatprep.subr.bf16.mxu0 0
    %1667 = vmatpush2.bf16.msra.mxu0 0
    %1668 = vmatprep.subr.bf16.mxu0 0
    %1669 = vmatpush2.bf16.msra.mxu0 0
    %1670 = vmatprep.subr.bf16.mxu0 0
    %1671 = vmatpush2.bf16.msra.mxu0 0
    %1672 = vmatprep.subr.bf16.mxu0 0
    %1673 = vmatpush2.bf16.msra.mxu0 0
    %1674 = vmatprep.subr.bf16.mxu0 0
    %1675 = vmatpush2.bf16.msra.mxu0 0
    %1676 = vmatprep.subr.bf16.mxu0 0
    %1677 = vmatpush2.bf16.msra.mxu0 0
    %1678 = vmatprep.subr.bf16.mxu0 0
    %1679 = vmatpush2.bf16.msra.mxu0 0
    %1680 = vmatprep.mubr.bf16.mxu0 0
    %1681 = vmatmul.mubr.bf16.gmra.mxu0 %v1640
    %v1682 = vpop.f32.mrf.mxu0
    %v1683 = vadd.f32 %v1587, %v1682
    %v1684 = vpop.f32.mrf.mxu0
    %v1685 = vadd.f32 %v1587, %v1684
    %v1686 = vpop.f32.mrf.mxu0
    %v1687 = vadd.f32 %v1592, %v1686
    %v1688 = vpop.f32.mrf.mxu0
    %v1689 = vadd.f32 %v1592, %v1688
    %1690 = vmatprep.mubr.bf16.mxu0 0
    %1691 = vmatmul.mubr.bf16.gmra.mxu0 %v1641
    %v1692 = vpop.f32.mrf.mxu0
    %v1693 = vadd.f32 %v1597, %v1692
    %v1694 = vpop.f32.mrf.mxu0
    %v1695 = vadd.f32 %v1597, %v1694
    %v1696 = vpop.f32.mrf.mxu0
    %v1697 = vadd.f32 %v1602, %v1696
    %v1698 = vpop.f32.mrf.mxu0
    %v1699 = vadd.f32 %v1602, %v1698
    %1700 = vmatprep.mubr.bf16.mxu0 0
    %1701 = vmatmul.mubr.bf16.gmra.mxu0 %v1642
    %v1702 = vpop.f32.mrf.mxu0
    %v1703 = vadd.f32 %v1607, %v1702
    %v1704 = vpop.f32.mrf.mxu0
    %v1705 = vadd.f32 %v1607, %v1704
    %v1706 = vpop.f32.mrf.mxu0
    %v1707 = vadd.f32 %v1612, %v1706
    %v1708 = vpop.f32.mrf.mxu0
    %v1709 = vadd.f32 %v1612, %v1708
    %1710 = vmatprep.mubr.bf16.mxu0 0
    %1711 = vmatmul.mubr.bf16.gmra.mxu0 %v1643
    %v1712 = vpop.f32.mrf.mxu0
    %v1713 = vadd.f32 %v1617, %v1712
    %v1714 = vpop.f32.mrf.mxu0
    %v1715 = vadd.f32 %v1617, %v1714
    %v1716 = vpop.f32.mrf.mxu0
    %v1717 = vadd.f32 %v1622, %v1716
    %v1718 = vpop.f32.mrf.mxu0
    %v1719 = vadd.f32 %v1622, %v1718
    %1720 = vdwg.mxu0
    %v1721 = vmax.f32 %v1683, 0.0
    %v1722 = vmax.f32 %v1685, 0.0
    %v1723 = vmax.f32 %v1687, 0.0
    %v1724 = vmax.f32 %v1689, 0.0
    %v1725 = vmax.f32 %v1693, 0.0
    %v1726 = vmax.f32 %v1695, 0.0
    %v1727 = vmax.f32 %v1697, 0.0
    %v1728 = vmax.f32 %v1699, 0.0
    %v1729 = vmax.f32 %v1703, 0.0
    %v1730 = vmax.f32 %v1705, 0.0
    %v1731 = vmax.f32 %v1707, 0.0
    %v1732 = vmax.f32 %v1709, 0.0
    %v1733 = vmax.f32 %v1713, 0.0
    %v1734 = vmax.f32 %v1715, 0.0
    %v1735 = vmax.f32 %v1717, 0.0
    %v1736 = vmax.f32 %v1719, 0.0
    %v1737 = vld [vmem:[%s12] sm:$0xf]
    %v1738 = vld [vmem:[%s12 + $0x4] sm:$0xf]
    %v1739 = vld [vmem:[%s12 + $0x8] sm:$0xf]
    %v1740 = vld [vmem:[%s12 + $0xc] sm:$0xf]
    %v1741 = vpack.c.bf16 %v1723, %v1721
    %v1742 = vpack.c.bf16 %v1724, %v1722
    %v1743 = vpack.c.bf16 %v1727, %v1725
    %v1744 = vpack.c.bf16 %v1728, %v1726
    %v1745 = vpack.c.bf16 %v1731, %v1729
    %v1746 = vpack.c.bf16 %v1732, %v1730
    %v1747 = vpack.c.bf16 %v1735, %v1733
    %v1748 = vpack.c.bf16 %v1736, %v1734
    %v1749 = vld [vmem:[%s13] sm:$0xff]
    %v1750 = vld [vmem:[%s13 + $0x8] sm:$0xff]
    %v1751 = vld [vmem:[%s13 + $0x10] sm:$0xff]
    %v1752 = vld [vmem:[%s13 + $0x18] sm:$0xff]
    %1754 = vset.pattern.permute.xlu0 0
    %1755 = vperm.xlu0 %1754, %v1749
    %v1756 = vpop.permute.xlu0 %1755
    %1759 = vset.pattern.permute.xlu0 0
    %1760 = vperm.xlu0 %1759, %v1750
    %v1761 = vpop.permute.xlu0 %1760
    %1764 = vset.pattern.permute.xlu0 0
    %1765 = vperm.xlu0 %1764, %v1751
    %v1766 = vpop.permute.xlu0 %1765
    %1769 = vset.pattern.permute.xlu0 0
    %1770 = vperm.xlu0 %1769, %v1752
    %v1771 = vpop.permute.xlu0 %1770
    %v1777 = vunpack.c.l.b16 %v1737
    %v1778 = vunpack.c.l.b16 %v1738
    %v1779 = vunpack.c.l.b16 %v1739
    %v1780 = vunpack.c.l.b16 %v1740
    %v1781 = vpack.c.b16 %v1778, %v1777
    %v1782 = vpack.c.b16 %v1780, %v1779
    %vm1783 = vcmask 523264
    %v1785 = vsel %vm1783, %v1781, 0
    %v1788 = vsel %vm1783, %v1782, 0
    %1790 = vmatprep.subr.bf16.mxu0 0
    %1791 = vmatpush1.bf16.msra.mxu0 0
    %1792 = vmatprep.subr.bf16.mxu0 0
    %1793 = vmatpush1.bf16.msra.mxu0 0
    %1794 = vmatprep.subr.bf16.mxu0 0
    %1795 = vmatpush1.bf16.msra.mxu0 0
    %1796 = vmatprep.subr.bf16.mxu0 0
    %1797 = vmatpush1.bf16.msra.mxu0 0
    %1798 = vmatprep.subr.bf16.mxu0 %v1748
    %1799 = vmatpush1.bf16.msra.mxu0 %v1747
    %1800 = vmatprep.subr.bf16.mxu0 %v1746
    %1801 = vmatpush1.bf16.msra.mxu0 %v1745
    %1802 = vmatprep.subr.bf16.mxu0 %v1744
    %1803 = vmatpush1.bf16.msra.mxu0 %v1743
    %1804 = vmatprep.subr.bf16.mxu0 %v1742
    %1805 = vmatpush1.bf16.msra.mxu0 %v1741
    %1806 = vmatprep.subr.bf16.mxu0 0
    %1807 = vmatpush2.bf16.msra.mxu0 0
    %1808 = vmatprep.subr.bf16.mxu0 0
    %1809 = vmatpush2.bf16.msra.mxu0 0
    %1810 = vmatprep.subr.bf16.mxu0 0
    %1811 = vmatpush2.bf16.msra.mxu0 0
    %1812 = vmatprep.subr.bf16.mxu0 0
    %1813 = vmatpush2.bf16.msra.mxu0 0
    %1814 = vmatprep.subr.bf16.mxu0 0
    %1815 = vmatpush2.bf16.msra.mxu0 0
    %1816 = vmatprep.subr.bf16.mxu0 0
    %1817 = vmatpush2.bf16.msra.mxu0 0
    %1818 = vmatprep.subr.bf16.mxu0 0
    %1819 = vmatpush2.bf16.msra.mxu0 0
    %1820 = vmatprep.subr.bf16.mxu0 0
    %1821 = vmatpush2.bf16.msra.mxu0 0
    %1822 = vmatprep.mubr.bf16.mxu0 0
    %1823 = vmatmul.mubr.bf16.gmra.mxu0 %v1785
    %v1824 = vpop.f32.mrf.mxu0
    %v1825 = vadd.f32 %v1756, %v1824
    %v1826 = vpop.f32.mrf.mxu0
    %v1827 = vadd.f32 %v1756, %v1826
    %v1828 = vpop.f32.mrf.mxu0
    %v1829 = vadd.f32 %v1761, %v1828
    %v1830 = vpop.f32.mrf.mxu0
    %v1831 = vadd.f32 %v1761, %v1830
    %1832 = vmatprep.mubr.bf16.mxu0 0
    %1833 = vmatmul.mubr.bf16.gmra.mxu0 %v1788
    %v1834 = vpop.f32.mrf.mxu0
    %v1835 = vadd.f32 %v1766, %v1834
    %v1836 = vpop.f32.mrf.mxu0
    %v1837 = vadd.f32 %v1766, %v1836
    %v1838 = vpop.f32.mrf.mxu0
    %v1839 = vadd.f32 %v1771, %v1838
    %v1840 = vpop.f32.mrf.mxu0
    %v1841 = vadd.f32 %v1771, %v1840
    %1842 = vdwg.mxu0
    %v1843 = vmax.f32 %v1825, 0.0
    %v1844 = vmax.f32 %v1827, 0.0
    %v1845 = vmax.f32 %v1829, 0.0
    %v1846 = vmax.f32 %v1831, 0.0
    %v1847 = vmax.f32 %v1835, 0.0
    %v1848 = vmax.f32 %v1837, 0.0
    %v1849 = vmax.f32 %v1839, 0.0
    %v1850 = vmax.f32 %v1841, 0.0
    %v1851 = vld [vmem:[%s14] sm:$0xff]
    %v1852 = vld [vmem:[%s14 + $0x8] sm:$0xff]
    %v1853 = vld [vmem:[%s14 + $0x10] sm:$0xff]
    %v1854 = vld [vmem:[%s14 + $0x18] sm:$0xff]
    %1856 = vset.pattern.permute.xlu0 0
    %1857 = vperm.xlu0 %1856, %v1851
    %v1858 = vpop.permute.xlu0 %1857
    %1861 = vset.pattern.permute.xlu0 0
    %1862 = vperm.xlu0 %1861, %v1852
    %v1863 = vpop.permute.xlu0 %1862
    %1866 = vset.pattern.permute.xlu0 0
    %1867 = vperm.xlu0 %1866, %v1853
    %v1868 = vpop.permute.xlu0 %1867
    %1871 = vset.pattern.permute.xlu0 0
    %1872 = vperm.xlu0 %1871, %v1854
    %v1873 = vpop.permute.xlu0 %1872
    %v1875 = vmul.f32 %v1843, %v1858
    %v1876 = vmul.f32 %v1844, %v1858
    %v1877 = vmul.f32 %v1845, %v1863
    %v1878 = vmul.f32 %v1846, %v1863
    %v1879 = vmul.f32 %v1847, %v1868
    %v1880 = vmul.f32 %v1848, %v1868
    %v1881 = vmul.f32 %v1849, %v1873
    %v1882 = vmul.f32 %v1850, %v1873
    %v1883 = vadd.f32 %v1875, %v1877
    %v1884 = vadd.f32 %v1883, %v1879
    %v1885 = vadd.f32 %v1884, %v1881
    %v1886 = vrot.slane %v1885, 4
    %v1887 = vadd.f32 %v1885, %v1886
    %v1888 = vrot.slane %v1887, 2
    %v1889 = vadd.f32 %v1887, %v1888
    %v1890 = vrot.slane %v1889, 1
    %v1891 = vadd.f32 %v1889, %v1890
    %v1892 = vadd.f32 %v1876, %v1878
    %v1893 = vadd.f32 %v1892, %v1880
    %v1894 = vadd.f32 %v1893, %v1882
    %v1895 = vrot.slane %v1894, 4
    %v1896 = vadd.f32 %v1894, %v1895
    %v1897 = vrot.slane %v1896, 2
    %v1898 = vadd.f32 %v1896, %v1897
    %v1899 = vrot.slane %v1898, 1
    %v1900 = vadd.f32 %v1898, %v1899
    %v1901 = vld [vmem:[#allocation2] sm:$0x1]
    %1903 = vset.pattern.permute.xlu0 0
    %1904 = vperm.xlu0 %1903, %v1901
    %v1905 = vpop.permute.xlu0 %1904
    %v1907 = vlaneseq
    %v1908 = vshrl.u32 %v1907, 7
    %v1909 = vsub.s32 0, %v1908
    %v1910 = vrot.slane %v1905, %v1909
    %v1911 = vadd.f32 %v1891, %v1910
    %v1912 = vadd.f32 %v1900, %v1910
    %v1913 = vsub.f32 0.0, %v1911
    %v1914 = vsub.f32 0.0, %v1912
    %v1915 = vmul.f32 %v1913, 1.442695
    %v1916 = vpow.pop %v1915
    %v1917 = vmul.f32 %v1914, 1.442695
    %v1918 = vpow.pop %v1917
    %v1919 = vadd.f32 %v1916, 1.0
    %v1920 = vadd.f32 %v1918, 1.0
    %v1921 = vrcp.pop %v1919
    %v1922 = vmul.f32 1.0, %v1921
    %v1923 = vrcp.pop %v1920
    %v1924 = vmul.f32 1.0, %v1923
    %v1927 = vcombine.low %v1922, %v1924
    %v1929 = vunpack.c.l.s4 1966171168
    %v1930 = vunpack.c.0.s8 %v1929
    %v1931 = vlaneseq
    %v1932 = vshrl.u32 %v1931, 7
    %v1933 = vsub.s32 %v1930, %v1932
    %v1934 = vrot.slane %v1927, %v1933
    %v1936 = vunpack.c.l.s4 1966171168
    %v1937 = vunpack.c.0.s8 %v1936
    %v1938 = vlaneseq
    %v1939 = vshrl.u32 %v1938, 7
    %v1940 = vsub.s32 %v1937, %v1939
    %v1941 = vrot.slane %v1934, %v1940
    %v1943 = vlaneseq
    %vm1944 = vcmp.ge.s32.totalorder %v1943, 0
    %vm1945 = vcmp.lt.s32.totalorder %v1943, 256
    %vm1946 = vmand %vm1944, %vm1945
    %1947 = vst.msk [vmem:[#allocation3] sm:$0x3] %vm1946, %v1941
    %v1948 = vld [vmem:[%s1] sm:$0x3]
    %v1949 = vmax.f32 %v1911, 0.0
    %v1950 = vmax.f32 %v1912, 0.0
    %v1952 = vlaneseq
    %v1953 = vshrl.u32 %v1952, 7
    %v1954 = vsub.s32 0, %v1953
    %v1955 = vrot.slane %v1948, %v1954
    %v1956 = vlaneseq
    %v1957 = vshrl.u32 %v1956, 7
    %v1958 = vsub.s32 1, %v1957
    %v1959 = vrot.slane %v1948, %v1958
    %v1962 = vmul.f32 %v1911, %v1955
    %v1963 = vmul.f32 %v1912, %v1959
    %v1964 = vsub.f32 %v1949, %v1962
    %v1965 = vsub.f32 %v1950, %v1963
    %v1966 = vand.u32 2147483647, %v1911
    %v1967 = vand.u32 2147483647, %v1912
    %v1968 = vsub.f32 0.0, %v1966
    %v1969 = vsub.f32 0.0, %v1967
    %v1970 = vmul.f32 %v1968, 1.442695
    %v1971 = vpow.pop %v1970
    %v1972 = vmul.f32 %v1969, 1.442695
    %v1973 = vpow.pop %v1972
    %v1974 = vadd.f32 %v1971, 1.0
    %v1975 = vadd.f32 %v1973, 1.0
    %v1976 = vlog2.pop %v1974
    %v1977 = vmul.f32 %v1976, 0.6931472
    %v1978 = vlog2.pop %v1975
    %v1979 = vmul.f32 %v1978, 0.6931472
    %v1980 = vadd.f32 %v1964, %v1977
    %v1981 = vadd.f32 %v1965, %v1979
    %v1982 = vlaneseq
    %v1983 = vand.u32 %v1982, 127
    %v1984 = vadd.s32 %v1983, 128
    %s1985 = smul.u32 0, 256
    %v1986 = vstv %s1985
    %v1987 = vadd.s32 %v1986, %v1983
    %v1988 = vadd.s32 %v1986, %v1984
    %vm1989 = vcmp.lt.s32.totalorder %v1987, 8
    %vm1990 = vcmp.lt.s32.totalorder %v1988, 8
    %v1991 = vsel %vm1989, %v1980, 0.0
    %v1992 = vsel %vm1990, %v1981, 0.0
    %vm1993 = vcmask 1040384
    %v1994 = vsel %vm1993, %v1991, 0.0
    %v1995 = vsel %vm1993, %v1992, 0.0
    %v1996 = vadd.f32 %v1994, %v1995
    %1997 = vadd.xlane.f32.xlu0 %v1996
    %v1998 = vpop.xlane.xlu0 %1997
    %v1999 = vrot.slane %v1998, 4
    %v2000 = vadd.f32 %v1998, %v1999
    %v2001 = vrot.slane %v2000, 2
    %v2002 = vadd.f32 %v2000, %v2001
    %v2003 = vrot.slane %v2002, 1
    %v2004 = vadd.f32 %v2002, %v2003
    %s2005 = vtos %v2004
    %s2006 = scalar_lea.smem [#allocation6], 0
    %2007 = sst [smem:[%s2006]] %s2005
    // Predicated region
    $region66: #{tpu_custom_call.1} parent=1 // pred_check
      _
    $region67: #{tpu_custom_call.1} parent=1 // pred_check_branch
      %2009 = sbr.rel (0) target = $region69
    $region68: #{tpu_custom_call.1} parent=1 // pred_region
      %s2011 = ssub.s32 32, 32
      %2012 = vsyncadd [#allocation4], %s2011
      %s2014 = sshll.u32 [#allocation3], 4
      %s2015 = int_to_ptr.vmem [resolvable:$true] %s2014
      %2017 = dma.vmem_to_hbm [thread:$0]  %s2015, 32, %s16, [#allocation4]
    $region69: #{tpu_custom_call.1} parent=1 // pred_fallthru
      _
    // Predicated region
    $region70: #{tpu_custom_call.1} parent=1 // pred_check
      _
    $region71: #{tpu_custom_call.1} parent=1 // pred_check_branch
      %2019 = sbr.rel (0) target = $region73
    $region72: #{tpu_custom_call.1} parent=1 // pred_region
      %s2021 = ssub.s32 16, 16
      %2022 = vsyncadd [#allocation5], %s2021
      %2025 = dma.smem_to_hbm [#allocation6], 16, %s17, [#allocation5]
    $region73: #{tpu_custom_call.1} parent=1 // pred_fallthru
      _
    // Predicated region
    $region74: #{tpu_custom_call.1} parent=1 // pred_check
      _
    $region75: #{tpu_custom_call.1} parent=1 // pred_check_branch
      %2027 = sbr.rel (0) target = $region77
    $region76: #{tpu_custom_call.1} parent=1 // pred_region
      %2028 = dma.done [#allocation4], 32
    $region77: #{tpu_custom_call.1} parent=1 // pred_fallthru
      _
    // Predicated region
    $region78: #{tpu_custom_call.1} parent=1 // pred_check
      _
    $region79: #{tpu_custom_call.1} parent=1 // pred_check_branch
      %2030 = sbr.rel (0) target = $region81
    $region80: #{tpu_custom_call.1} parent=1 // pred_region
      %2031 = dma.done [#allocation5], 16
    $region81: #{tpu_custom_call.1} parent=1 // pred_fallthru
      _
    %2032 = sfence
    %2033 = vsyncpa [#allocation4], 1
    %2034 = vsyncpa [#allocation5], 1

</llo_original>
